<compile_context>
chip_gen: v7x
topology: tpu7x:2x2x1
jax: 0.10.0
libtpu: 0.0.40
codegen_flags: <defaults>
</compile_context>

<pallas_src>
import functools

import jax
import jax.numpy as jnp
from jax.experimental import pallas as pl
from jax.experimental.pallas import tpu as pltpu

LANE = 128  # TPU lane width


def _round_up(x, m):
    return ((x + m - 1) // m) * m


def _largest_divisor_block(n_pad, cap):
    """Largest hardware-friendly tile <= cap that divides n_pad (n_pad % 256 == 0)."""
    if n_pad <= cap:
        return n_pad
    for c in (cap, cap // 2, cap // 4, 256):
        if c >= 256 and n_pad % c == 0:
            return c
    return 256


def _choose_blocks(num_nodes):
    # Pad the node count to a multiple of 256 so tiles never fall back to 128
    # (128-row tiles reach ~29% of the HBM roofline vs ~85% at 512).
    n_pad = _round_up(max(num_nodes, 256), 256)
    block_rows = _largest_divisor_block(n_pad, 512)    # output/A row tile
    block_red = _largest_divisor_block(n_pad, 1024)    # reduction tile along N
    return n_pad, block_rows, block_red


# --------------------------------------------------------------------------
# Fused GCN layer kernel:
#   grid = (row blocks of A/O [parallel], reduction blocks along N [arbitrary])
#   acc (f32, VMEM scratch)  +=  A_ik @ X_k                  (every step)
#   O_i = act(acc @ W + b)                                    (last k step)
# When fuse_weight=False the final W matmul is skipped (input is already X@W).
# When x_resident=True, X lives fully in VMEM (constant index_map) and the
# k-chunk is sliced in-kernel with pl.ds.
# --------------------------------------------------------------------------
def _gcn_agg_kernel(*refs, apply_act, fuse_weight, x_resident, block_red):
    if fuse_weight:
        a_ref, x_ref, w_ref, b_ref, o_ref, acc_ref = refs
    else:
        a_ref, x_ref, b_ref, o_ref, acc_ref = refs
        w_ref = None

    k = pl.program_id(1)

    @pl.when(k == 0)
    def _():
        acc_ref[...] = jnp.zeros_like(acc_ref)

    if x_resident:
        start = pl.multiple_of(k * block_red, block_red)
        xk = x_ref[pl.ds(start, block_red), :]
    else:
        xk = x_ref[...]

    acc_ref[...] += jnp.dot(a_ref[...], xk, preferred_element_type=jnp.float32)

    @pl.when(k == pl.num_programs(1) - 1)
    def _():
        out = acc_ref[...]
        if fuse_weight:
            out = jnp.dot(out.astype(jnp.bfloat16), w_ref[...],
                          preferred_element_type=jnp.float32)
        out = out + b_ref[...]                 # bias AFTER aggregation
        if apply_act:
            out = jnp.maximum(out, 0.0)
        o_ref[...] = out.astype(o_ref.dtype)


def gcn_aggregate(a_bf16, x_bf16, b_f32, w_bf16=None, *, apply_act,
                  block_rows, block_red):
    n_pad = a_bf16.shape[0]
    f_in = x_bf16.shape[1]
    fuse_weight = w_bf16 is not None
    f_out = w_bf16.shape[1] if fuse_weight else f_in
    acc_cols = f_in

    # Keep X fully VMEM-resident across row blocks when it is small enough.
    x_bytes = n_pad * f_in * 2
    x_resident = x_bytes <= (8 << 20)

    if x_resident:
        x_spec = pl.BlockSpec((n_pad, f_in), lambda i, k: (0, 0))
    else:
        x_spec = pl.BlockSpec((block_red, f_in), lambda i, k: (k, 0))

    in_specs = [pl.BlockSpec((block_rows, block_red), lambda i, k: (i, k)),
                x_spec]
    inputs = [a_bf16, x_bf16]
    if fuse_weight:
        in_specs.append(pl.BlockSpec((f_in, f_out), lambda i, k: (0, 0)))
        inputs.append(w_bf16)
    in_specs.append(pl.BlockSpec((1, f_out), lambda i, k: (0, 0)))
    inputs.append(b_f32)

    # VMEM budget (double buffers on streamed inputs/output) -- cap at 64 MiB
    # so the same setting is safe on v7x (64 MiB VMEM) and v5e/v6e (128 MiB).
    vmem = (2 * block_rows * block_red * 2
            + (2 * x_bytes if x_resident else 2 * block_red * f_in * 2)
            + block_rows * acc_cols * 4
            + 2 * block_rows * f_out * 2
            + (f_in * f_out * 2 if fuse_weight else 0)
            + 2 * f_out * 4)
    vmem_limit = min(max(int(vmem * 1.25) + (2 << 20), 32 << 20), 64 << 20)

    return pl.pallas_call(
        functools.partial(_gcn_agg_kernel, apply_act=apply_act,
                          fuse_weight=fuse_weight, x_resident=x_resident,
                          block_red=block_red),
        out_shape=jax.ShapeDtypeStruct((n_pad, f_out), jnp.bfloat16),
        grid_spec=pltpu.PrefetchScalarGridSpec(
            num_scalar_prefetch=0,
            grid=(n_pad // block_rows, n_pad // block_red),
            in_specs=in_specs,
            out_specs=pl.BlockSpec((block_rows, f_out), lambda i, k: (i, 0)),
            scratch_shapes=[pltpu.VMEM((block_rows, acc_cols), jnp.float32)],
        ),
        compiler_params=pltpu.CompilerParams(
            dimension_semantics=("parallel", "arbitrary"),
            vmem_limit_bytes=vmem_limit),
    )(*inputs)


# --------------------------------------------------------------------------
# Fallback feature transform  H = X @ W  (only used when the padded input
# feature dim is wider than the output dim, so X@W-first is fewer FLOPs).
# --------------------------------------------------------------------------
def _xw_kernel(x_ref, w_ref, h_ref):
    h_ref[...] = jnp.dot(x_ref[...], w_ref[...],
                         preferred_element_type=jnp.float32).astype(h_ref.dtype)


def feature_transform(x_bf16, w_bf16):
    n_pad, f_in = x_bf16.shape
    f_out = w_bf16.shape[1]
    block_rows = _largest_divisor_block(n_pad, 2048)   # own, larger row tile
    return pl.pallas_call(
        _xw_kernel,
        out_shape=jax.ShapeDtypeStruct((n_pad, f_out), jnp.bfloat16),
        grid_spec=pltpu.PrefetchScalarGridSpec(
            num_scalar_prefetch=0,
            grid=(n_pad // block_rows,),
            in_specs=[
                pl.BlockSpec((block_rows, f_in), lambda i: (i, 0)),
                pl.BlockSpec((f_in, f_out), lambda i: (0, 0)),   # resident
            ],
            out_specs=pl.BlockSpec((block_rows, f_out), lambda i: (i, 0)),
        ),
        compiler_params=pltpu.CompilerParams(
            dimension_semantics=("parallel",)),
    )(x_bf16, w_bf16)


def gcn_layer(a_bf16, x_bf16, w_bf16, b_f32, *, apply_act, block_rows, block_red):
    """One GCN layer: act(A @ (X @ W) + b), fused when beneficial."""
    f_in, f_out = w_bf16.shape
    if f_in <= f_out:
        # Fused: (A @ X) @ W -- same FLOPs when f_in == f_out, one kernel.
        return gcn_aggregate(a_bf16, x_bf16, b_f32, w_bf16, apply_act=apply_act,
                             block_rows=block_rows, block_red=block_red)
    # Wide input features: transform first, then aggregate (no weight fusion).
    h = feature_transform(x_bf16, w_bf16)
    return gcn_aggregate(a_bf16, h, b_f32, None, apply_act=apply_act,
                         block_rows=block_rows, block_red=block_red)


# --------------------------------------------------------------------------
# Graph glue (plain JAX): symmetric-normalized dense adjacency with self loops
# D^{-1/2} (A + I) D^{-1/2}, zero-padded to n_pad and stored bf16.
# TODO(synk): replace dense adjacency with block-sparse tiles skipped via
#             PrefetchScalarGridSpec (real graphs are >99% sparse).
# --------------------------------------------------------------------------
def build_normalized_adjacency(edge_index, num_nodes, n_pad):
    src, dst = edge_index[0], edge_index[1]
    adj = jnp.zeros((num_nodes, num_nodes), jnp.float32)
    adj = adj.at[src, dst].set(1.0)                     # unweighted edges
    adj = jnp.maximum(adj, adj.T)                       # make undirected
    adj = adj + jnp.eye(num_nodes, dtype=jnp.float32)   # self loops
    deg = adj.sum(axis=-1)
    d_inv_sqrt = jnp.where(deg > 0, 1.0 / jnp.sqrt(deg), 0.0)
    a_norm = d_inv_sqrt[:, None] * adj * d_inv_sqrt[None, :]
    a_pad = jnp.zeros((n_pad, n_pad), jnp.float32)
    a_pad = a_pad.at[:num_nodes, :num_nodes].set(a_norm)
    return a_pad.astype(jnp.bfloat16)


class S2GAEPallas:
    """S2GAE whose encoder is a 2-layer GCN; forward == encoder forward.

    Returns the per-layer embeddings [x, h1, h2] (consumed as `z` in
    train_step, which uses z[1:])."""

    def __init__(self, in_dim, hidden_dim, out_dim, key):
        self.in_dim, self.hidden_dim, self.out_dim = in_dim, hidden_dim, out_dim
        # Pad feature dims to lane multiples so all MXU tiles / stores are full.
        self.in_pad = _round_up(in_dim, LANE)
        self.hid_pad = _round_up(hidden_dim, LANE)
        self.out_pad = _round_up(out_dim, LANE)

        k1, k2, k3, k4 = jax.random.split(key, 4)
        w1 = jax.random.normal(k1, (in_dim, hidden_dim), jnp.float32) * (
            (2.0 / (in_dim + hidden_dim)) ** 0.5)
        w2 = jax.random.normal(k2, (hidden_dim, out_dim), jnp.float32) * (
            (2.0 / (hidden_dim + out_dim)) ** 0.5)
        b1 = jax.random.normal(k3, (1, hidden_dim), jnp.float32) * 0.1
        b2 = jax.random.normal(k4, (1, out_dim), jnp.float32) * 0.1

        # Unpadded f32 copies only for the reference check in __main__.
        self.w1_ref, self.b1_ref, self.w2_ref, self.b2_ref = w1, b1, w2, b2

        # Padded weights, cast to bf16 ONCE here (no per-forward astype pass).
        self.w1 = jnp.zeros((self.in_pad, self.hid_pad), jnp.float32
                            ).at[:in_dim, :hidden_dim].set(w1).astype(jnp.bfloat16)
        self.w2 = jnp.zeros((self.hid_pad, self.out_pad), jnp.float32
                            ).at[:hidden_dim, :out_dim].set(w2).astype(jnp.bfloat16)
        # Bias stays f32 (added onto the f32 accumulator).
        self.b1 = jnp.zeros((1, self.hid_pad), jnp.float32
                            ).at[:, :hidden_dim].set(b1)
        self.b2 = jnp.zeros((1, self.out_pad), jnp.float32
                            ).at[:, :out_dim].set(b2)

    def precompute_adjacency(self, edge_index, num_nodes):
        """Hoist/cache-able: a_norm depends only on the (static) edge_index."""
        n_pad, _, _ = _choose_blocks(num_nodes)
        return build_normalized_adjacency(edge_index, num_nodes, n_pad)

    def forward(self, x, edge_index, a_norm=None):
        num_nodes = x.shape[0]
        n_pad, block_rows, block_red = _choose_blocks(num_nodes)

        if a_norm is None:  # built once, reused by both layers
            a_norm = self.precompute_adjacency(edge_index, num_nodes)
        assert a_norm.shape == (n_pad, n_pad)

        x_pad = jnp.zeros((n_pad, self.in_pad), jnp.bfloat16
                          ).at[:num_nodes, :self.in_dim].set(x.astype(jnp.bfloat16))

        # Layer 1: h1 = relu((A @ X) @ W1 + b1)     -- fused, bf16 output.
        h1 = gcn_layer(a_norm, x_pad, self.w1, self.b1, apply_act=True,
                       block_rows=block_rows, block_red=block_red)
        # Layer 2: h2 = (A @ H1) @ W2 + b2          -- fused, no activation.
        h2 = gcn_layer(a_norm, h1, self.w2, self.b2, apply_act=False,
                       block_rows=block_rows, block_red=block_red)

        # Only the small sliced returns are up-cast to f32 for callers.
        return [x,
                h1[:num_nodes, :self.hidden_dim].astype(jnp.float32),
                h2[:num_nodes, :self.out_dim].astype(jnp.float32)]


def _reference_forward(x, edge_index, w1, b1, w2, b2, num_nodes):
    """Pure-JAX f32 reference of the 2-layer GCN encoder forward."""
    src, dst = edge_index[0], edge_index[1]
    adj = jnp.zeros((num_nodes, num_nodes), jnp.float32).at[src, dst].set(1.0)
    adj = jnp.maximum(adj, adj.T) + jnp.eye(num_nodes, dtype=jnp.float32)
    deg = adj.sum(-1)
    dis = jnp.where(deg > 0, 1.0 / jnp.sqrt(deg), 0.0)
    a = dis[:, None] * adj * dis[None, :]
    h1 = jnp.maximum(a @ (x @ w1) + b1, 0.0)
    h2 = a @ (h1 @ w2) + b2
    return h1, h2


if __name__ == "__main__":
    key = jax.random.PRNGKey(0)
    k_x, k_e, k_p = jax.random.split(key, 3)

    num_nodes = 300       # pads to 512 -> 512x512 A tiles (no 128 fallback)
    in_dim = 32
    hidden_dim = 64
    out_dim = 64
    num_edges = 512

    x = jax.random.normal(k_x, (num_nodes, in_dim), jnp.float32)
    edge_index = jax.random.randint(k_e, (2, num_edges), 0, num_nodes,
                                    dtype=jnp.int32)

    model = S2GAEPallas(in_dim, hidden_dim, out_dim, k_p)
    z = model.forward(x, edge_index)
    jax.block_until_ready(z)

    assert z[0].shape == (num_nodes, in_dim)
    assert z[1].shape == (num_nodes, hidden_dim)
    assert z[2].shape == (num_nodes, out_dim)

    # Correctness check vs. pure-JAX f32 reference (bf16 MXU operands + bf16
    # intermediate storage -> loose tolerance).
    h1_ref, h2_ref = _reference_forward(x, edge_index, model.w1_ref,
                                        model.b1_ref, model.w2_ref,
                                        model.b2_ref, num_nodes)
    assert jnp.allclose(z[1], h1_ref, atol=1e-1, rtol=1e-1)
    assert jnp.allclose(z[2], h2_ref, atol=1e-1, rtol=1e-1)

    print("KERNEL_OK")
</pallas_src>

<mosaic_0001>
module attributes {stable_mosaic.version = 11 : i64} {
  func.func @_gcn_agg_kernel(%arg0: i32, %arg1: i32, %arg2: memref<512x512xbf16, #tpu.memory_space<vmem>>, %arg3: memref<512x128xbf16, #tpu.memory_space<vmem>>, %arg4: memref<128x128xbf16, #tpu.memory_space<vmem>>, %arg5: memref<1x128xf32, #tpu.memory_space<vmem>>, %arg6: memref<512x128xbf16, #tpu.memory_space<vmem>>, %arg7: memref<512x128xf32, #tpu.memory_space<vmem>>) attributes {dimension_semantics = [#tpu.dimension_semantics<parallel>, #tpu.dimension_semantics<arbitrary>], iteration_bounds = array<i64: 1, 1>, scalar_prefetch = 0 : i64, scratch_operands = 1 : i64, tpu.core_type = #tpu.core_type<tc>, window_params = [{transform_indices = @transform_0, window_bounds = array<i64: 512, 512>}, {pipeline_mode = #tpu.pipeline_mode<synchronous>, transform_indices = @transform_1, window_bounds = array<i64: 512, 128>}, {pipeline_mode = #tpu.pipeline_mode<synchronous>, transform_indices = @transform_2, window_bounds = array<i64: 128, 128>}, {pipeline_mode = #tpu.pipeline_mode<synchronous>, transform_indices = @transform_3, window_bounds = array<i64: 1, 128>}, {transform_indices = @transform_4, window_bounds = array<i64: 512, 128>}]} {
    %c0_i32 = arith.constant 0 : i32
    %0 = arith.cmpi eq, %arg1, %c0_i32 : i32
    %1 = arith.extui %0 : i1 to i32
    %c0_i32_0 = arith.constant 0 : i32
    %2 = arith.cmpi ne, %1, %c0_i32_0 : i32
    scf.if %2 {
      %cst_9 = arith.constant 0.000000e+00 : f32
      %15 = vector.broadcast %cst_9 : f32 to vector<512x128xf32>
      %c0_10 = arith.constant 0 : index
      %c0_11 = arith.constant 0 : index
      %16 = vector.load %arg7[%c0_10, %c0_11] : memref<512x128xf32, #tpu.memory_space<vmem>>, vector<512x128xf32>
      tpu.vector_store %arg7[%c0_10, %c0_11], %15 {strides = array<i32>} : memref<512x128xf32, #tpu.memory_space<vmem>>, vector<512x128xf32>,
    } else {
    }
    %c512_i32 = arith.constant 512 : i32
    %3 = arith.muli %arg1, %c512_i32 : i32
    %4 = tpu.assume_multiple %3, 512 : i32
    %5 = arith.index_cast %4 : i32 to index
    %c0 = arith.constant 0 : index
    %6 = vector.load %arg3[%5, %c0] : memref<512x128xbf16, #tpu.memory_space<vmem>>, vector<512x128xbf16>
    %c0_1 = arith.constant 0 : index
    %c0_2 = arith.constant 0 : index
    %7 = vector.load %arg7[%c0_1, %c0_2] : memref<512x128xf32, #tpu.memory_space<vmem>>, vector<512x128xf32>
    %c0_3 = arith.constant 0 : index
    %c0_4 = arith.constant 0 : index
    %8 = vector.load %arg2[%c0_3, %c0_4] : memref<512x512xbf16, #tpu.memory_space<vmem>>, vector<512x512xbf16>
    %cst = arith.constant dense<0.000000e+00> : vector<512x128xf32>
    %9 = tpu.matmul %8, %6, %cst {dimension_numbers = #tpu.dot_dimension_numbers<[1], [0], [0], [1], [0, 0, 1, 1], [], []>} : vector<512x512xbf16>, vector<512x128xbf16>, vector<512x128xf32> -> vector<512x128xf32>
    %10 = arith.addf %7, %9 : vector<512x128xf32>
    %c0_5 = arith.constant 0 : index
    %c0_6 = arith.constant 0 : index
    %11 = vector.load %arg7[%c0_5, %c0_6] : memref<512x128xf32, #tpu.memory_space<vmem>>, vector<512x128xf32>
    tpu.vector_store %arg7[%c0_5, %c0_6], %10 {strides = array<i32>} : memref<512x128xf32, #tpu.memory_space<vmem>>, vector<512x128xf32>,
    %c0_i32_7 = arith.constant 0 : i32
    %12 = arith.cmpi eq, %arg1, %c0_i32_7 : i32
    %13 = arith.extui %12 : i1 to i32
    %c0_i32_8 = arith.constant 0 : i32
    %14 = arith.cmpi ne, %13, %c0_i32_8 : i32
    scf.if %14 {
      %c0_9 = arith.constant 0 : index
      %c0_10 = arith.constant 0 : index
      %15 = vector.load %arg7[%c0_9, %c0_10] : memref<512x128xf32, #tpu.memory_space<vmem>>, vector<512x128xf32>
      %16 = arith.truncf %15 : vector<512x128xf32> to vector<512x128xbf16>
      %c0_11 = arith.constant 0 : index
      %c0_12 = arith.constant 0 : index
      %17 = vector.load %arg4[%c0_11, %c0_12] : memref<128x128xbf16, #tpu.memory_space<vmem>>, vector<128x128xbf16>
      %cst_13 = arith.constant dense<0.000000e+00> : vector<512x128xf32>
      %18 = tpu.matmul %16, %17, %cst_13 {dimension_numbers = #tpu.dot_dimension_numbers<[1], [0], [0], [1], [0, 0, 1, 1], [], []>} : vector<512x128xbf16>, vector<128x128xbf16>, vector<512x128xf32> -> vector<512x128xf32>
      %c0_14 = arith.constant 0 : index
      %c0_15 = arith.constant 0 : index
      %19 = vector.load %arg5[%c0_14, %c0_15] : memref<1x128xf32, #tpu.memory_space<vmem>>, vector<1x128xf32>
      %20 = vector.broadcast %19 : vector<1x128xf32> to vector<512x128xf32>
      %21 = arith.addf %18, %20 : vector<512x128xf32>
      %cst_16 = arith.constant 0.000000e+00 : f32
      %22 = vector.broadcast %cst_16 : f32 to vector<512x128xf32>
      %23 = arith.maximumf %21, %22 : vector<512x128xf32>
      %24 = arith.truncf %23 : vector<512x128xf32> to vector<512x128xbf16>
      %c0_17 = arith.constant 0 : index
      %c0_18 = arith.constant 0 : index
      %25 = vector.load %arg6[%c0_17, %c0_18] : memref<512x128xbf16, #tpu.memory_space<vmem>>, vector<512x128xbf16>
      tpu.vector_store %arg6[%c0_17, %c0_18], %24 {strides = array<i32>} : memref<512x128xbf16, #tpu.memory_space<vmem>>, vector<512x128xbf16>,
    } else {
    }
    return
  }
  func.func @transform_0(%arg0: i32, %arg1: i32) -> (i32, i32) {
    %c0_i32 = arith.constant 0 : i32
    return %arg0, %arg1 : i32, i32
  }
  func.func @transform_1(%arg0: i32, %arg1: i32) -> (i32, i32) {
    %c0_i32 = arith.constant 0 : i32
    %c0_i32_0 = arith.constant 0 : i32
    %c0_i32_1 = arith.constant 0 : i32
    return %c0_i32, %c0_i32_0 : i32, i32
  }
  func.func @transform_2(%arg0: i32, %arg1: i32) -> (i32, i32) {
    %c0_i32 = arith.constant 0 : i32
    %c0_i32_0 = arith.constant 0 : i32
    %c0_i32_1 = arith.constant 0 : i32
    return %c0_i32, %c0_i32_0 : i32, i32
  }
  func.func @transform_3(%arg0: i32, %arg1: i32) -> (i32, i32) {
    %c0_i32 = arith.constant 0 : i32
    %c0_i32_0 = arith.constant 0 : i32
    %c0_i32_1 = arith.constant 0 : i32
    return %c0_i32, %c0_i32_0 : i32, i32
  }
  func.func @transform_4(%arg0: i32, %arg1: i32) -> (i32, i32) {
    %c0_i32 = arith.constant 0 : i32
    %c0_i32_0 = arith.constant 0 : i32
    return %arg0, %c0_i32 : i32, i32
  }
}

</mosaic_0001>

<llo_original>
// kernel: tpu_custom_call.1
$region0: #{tpu_custom_call.1}
  #allocation0 [shape = 'u32[]', space=smem, size = 0x4, offset = 0x4, fixed_abs, tag = 'smem constant byte address 0x4 - core index']
  #allocation1 [shape = 'u32[144,128]{1,0:T(1,128)}', space=vmem, size = 0x12000, scoped, tag = 'internal scratch']
  #allocation2 [shape = 'f32[512,128]{1,0:T(8,128)}', space=vmem, size = 0x40000, scoped, tag = 'scratch operand']
  %s0 = inlined_call_operand.hbm [shape: bf16[512,512], index: 0, kind: input, shape index: {}]
  %s1 = inlined_call_operand.hbm [shape: bf16[512,128], index: 1, kind: input, shape index: {}]
  %s2 = inlined_call_operand.hbm [shape: bf16[128,128], index: 2, kind: input, shape index: {}]
  %s3 = inlined_call_operand.vmem [shape: f32[1,128], index: 3, kind: input, shape index: {}]
  %s4 = inlined_call_operand.hbm [shape: bf16[512,128], index: 4, kind: output, shape index: {}]
  %s5 = sld [smem:[#allocation0]]
  $region46: #{tpu_custom_call.1} parent=0
    _
  %s7 = ssub.s32 1, %s5
  %s8 = scalar_select 0, %s7, %s5
  $region1: #{tpu_custom_call.1} parent=0
    #allocation3 [shape = 'u8[524288]{0}', space=vmem, size = 0x80000, scoped, tag = 'input window, operand 0, single buffered']
    #allocation4 [shape = 's32[1]{0}', space=sflag, size = 0x4, scoped, tag = 'scoped memory for tpu_custom_call.1']
    #allocation5 [shape = 's32[1]{0}', space=sflag, size = 0x4, scoped, tag = 'scoped memory for tpu_custom_call.1']
    #allocation6 [shape = 'u8[131072]{0}', space=vmem, size = 0x20000, scoped, tag = 'input window, operand 1, single buffered']
    #allocation7 [shape = 's32[1]{0}', space=sflag, size = 0x4, scoped, tag = 'scoped memory for tpu_custom_call.1']
    #allocation8 [shape = 'u8[32768]{0}', space=vmem, size = 0x8000, scoped, tag = 'input window, operand 2, single buffered']
    #allocation9 [shape = 'u8[131072]{0}', space=vmem, size = 0x20000, scoped, tag = 'output window, operand 0, single buffered']
    %9 = vsyncpa [#allocation4], 0
    %10 = vsyncpa [#allocation7], 0
    %11 = vsyncpa [#allocation5], 0
    // Predicated region
    $region2: #{tpu_custom_call.1} parent=1 // pred_check
      _
    $region3: #{tpu_custom_call.1} parent=1 // pred_check_branch
      %13 = sbr.rel (0) target = $region5
    $region4: #{tpu_custom_call.1} parent=1 // pred_region
      %s15 = ssub.s32 16384, 16384
      %16 = vsyncadd [#allocation4], %s15
      %s17 = sshll.u32 [#allocation3], 4
      %s18 = int_to_ptr.vmem [resolvable:$true] %s17
      %23 = dma.hbm_to_vmem [thread:$0]  %s0, 16384, %s18, [#allocation4], 256, 256, 16
    $region5: #{tpu_custom_call.1} parent=1 // pred_fallthru
      _
    // Predicated region
    $region6: #{tpu_custom_call.1} parent=1 // pred_check
      _
    $region7: #{tpu_custom_call.1} parent=1 // pred_check_branch
      %25 = sbr.rel (0) target = $region9
    $region8: #{tpu_custom_call.1} parent=1 // pred_region
      %s27 = ssub.s32 4096, 4096
      %28 = vsyncadd [#allocation7], %s27
      %s29 = sshll.u32 [#allocation6], 4
      %s30 = int_to_ptr.vmem [resolvable:$true] %s29
      %35 = dma.hbm_to_vmem [thread:$0]  %s1, 4096, %s30, [#allocation7], 64, 64, 4
    $region9: #{tpu_custom_call.1} parent=1 // pred_fallthru
      _
    // Predicated region
    $region10: #{tpu_custom_call.1} parent=1 // pred_check
      _
    $region11: #{tpu_custom_call.1} parent=1 // pred_check_branch
      %37 = sbr.rel (0) target = $region13
    $region12: #{tpu_custom_call.1} parent=1 // pred_region
      %s39 = ssub.s32 1024, 1024
      %40 = vsyncadd [#allocation7], %s39
      %s41 = sshll.u32 [#allocation8], 4
      %s42 = int_to_ptr.vmem [resolvable:$true] %s41
      %47 = dma.hbm_to_vmem [thread:$0]  %s2, 1024, %s42, [#allocation7], 64, 64, 4
    $region13: #{tpu_custom_call.1} parent=1 // pred_fallthru
      _
    // Predicated region
    $region14: #{tpu_custom_call.1} parent=1 // pred_check
      _
    $region15: #{tpu_custom_call.1} parent=1 // pred_check_branch
      %49 = sbr.rel (0) target = $region17
    $region16: #{tpu_custom_call.1} parent=1 // pred_region
      _
    $region17: #{tpu_custom_call.1} parent=1 // pred_fallthru
      _
    // Predicated region
    $region18: #{tpu_custom_call.1} parent=1 // pred_check
      _
    $region19: #{tpu_custom_call.1} parent=1 // pred_check_branch
      %51 = sbr.rel (0) target = $region21
    $region20: #{tpu_custom_call.1} parent=1 // pred_region
      %52 = dma.done [#allocation4], 16384
    $region21: #{tpu_custom_call.1} parent=1 // pred_fallthru
      _
    // Predicated region
    $region22: #{tpu_custom_call.1} parent=1 // pred_check
      _
    $region23: #{tpu_custom_call.1} parent=1 // pred_check_branch
      %54 = sbr.rel (0) target = $region25
    $region24: #{tpu_custom_call.1} parent=1 // pred_region
      %55 = dma.done [#allocation7], 4096
    $region25: #{tpu_custom_call.1} parent=1 // pred_fallthru
      _
    // Predicated region
    $region26: #{tpu_custom_call.1} parent=1 // pred_check
      _
    $region27: #{tpu_custom_call.1} parent=1 // pred_check_branch
      %57 = sbr.rel (0) target = $region29
    $region28: #{tpu_custom_call.1} parent=1 // pred_region
      %58 = dma.done [#allocation7], 1024
    $region29: #{tpu_custom_call.1} parent=1 // pred_fallthru
      _
    %p60 = scmp.eq.s32.totalorder 0, 0
    // Predicated region
    $region30: #{tpu_custom_call.1} parent=1 // pred_check
      %p61 = pneg %p60
    $region31: #{tpu_custom_call.1} parent=1 // pred_check_branch
      %63 = sbr.rel (%p61) target = $region33
    $region32: #{tpu_custom_call.1} parent=1 // pred_region
      %64 = vst [vmem:[#allocation2] sm:$0xff] 0.0
      %65 = vst [vmem:[#allocation2 + $0x8] sm:$0xff] 0.0
      %66 = vst [vmem:[#allocation2 + $0x10] sm:$0xff] 0.0
      %67 = vst [vmem:[#allocation2 + $0x18] sm:$0xff] 0.0
      %68 = vst [vmem:[#allocation2 + $0x20] sm:$0xff] 0.0
      %69 = vst [vmem:[#allocation2 + $0x28] sm:$0xff] 0.0
      %70 = vst [vmem:[#allocation2 + $0x30] sm:$0xff] 0.0
      %71 = vst [vmem:[#allocation2 + $0x38] sm:$0xff] 0.0
      %72 = vst [vmem:[#allocation2 + $0x40] sm:$0xff] 0.0
      %73 = vst [vmem:[#allocation2 + $0x48] sm:$0xff] 0.0
      %74 = vst [vmem:[#allocation2 + $0x50] sm:$0xff] 0.0
      %75 = vst [vmem:[#allocation2 + $0x58] sm:$0xff] 0.0
      %76 = vst [vmem:[#allocation2 + $0x60] sm:$0xff] 0.0
      %77 = vst [vmem:[#allocation2 + $0x68] sm:$0xff] 0.0
      %78 = vst [vmem:[#allocation2 + $0x70] sm:$0xff] 0.0
      %79 = vst [vmem:[#allocation2 + $0x78] sm:$0xff] 0.0
      %80 = vst [vmem:[#allocation2 + $0x80] sm:$0xff] 0.0
      %81 = vst [vmem:[#allocation2 + $0x88] sm:$0xff] 0.0
      %82 = vst [vmem:[#allocation2 + $0x90] sm:$0xff] 0.0
      %83 = vst [vmem:[#allocation2 + $0x98] sm:$0xff] 0.0
      %84 = vst [vmem:[#allocation2 + $0xa0] sm:$0xff] 0.0
      %85 = vst [vmem:[#allocation2 + $0xa8] sm:$0xff] 0.0
      %86 = vst [vmem:[#allocation2 + $0xb0] sm:$0xff] 0.0
      %87 = vst [vmem:[#allocation2 + $0xb8] sm:$0xff] 0.0
      %88 = vst [vmem:[#allocation2 + $0xc0] sm:$0xff] 0.0
      %89 = vst [vmem:[#allocation2 + $0xc8] sm:$0xff] 0.0
      %90 = vst [vmem:[#allocation2 + $0xd0] sm:$0xff] 0.0
      %91 = vst [vmem:[#allocation2 + $0xd8] sm:$0xff] 0.0
      %92 = vst [vmem:[#allocation2 + $0xe0] sm:$0xff] 0.0
      %93 = vst [vmem:[#allocation2 + $0xe8] sm:$0xff] 0.0
      %94 = vst [vmem:[#allocation2 + $0xf0] sm:$0xff] 0.0
      %95 = vst [vmem:[#allocation2 + $0xf8] sm:$0xff] 0.0
      %96 = vst [vmem:[#allocation2 + $0x100] sm:$0xff] 0.0
      %97 = vst [vmem:[#allocation2 + $0x108] sm:$0xff] 0.0
      %98 = vst [vmem:[#allocation2 + $0x110] sm:$0xff] 0.0
      %99 = vst [vmem:[#allocation2 + $0x118] sm:$0xff] 0.0
      %100 = vst [vmem:[#allocation2 + $0x120] sm:$0xff] 0.0
      %101 = vst [vmem:[#allocation2 + $0x128] sm:$0xff] 0.0
      %102 = vst [vmem:[#allocation2 + $0x130] sm:$0xff] 0.0
      %103 = vst [vmem:[#allocation2 + $0x138] sm:$0xff] 0.0
      %104 = vst [vmem:[#allocation2 + $0x140] sm:$0xff] 0.0
      %105 = vst [vmem:[#allocation2 + $0x148] sm:$0xff] 0.0
      %106 = vst [vmem:[#allocation2 + $0x150] sm:$0xff] 0.0
      %107 = vst [vmem:[#allocation2 + $0x158] sm:$0xff] 0.0
      %108 = vst [vmem:[#allocation2 + $0x160] sm:$0xff] 0.0
      %109 = vst [vmem:[#allocation2 + $0x168] sm:$0xff] 0.0
      %110 = vst [vmem:[#allocation2 + $0x170] sm:$0xff] 0.0
      %111 = vst [vmem:[#allocation2 + $0x178] sm:$0xff] 0.0
      %112 = vst [vmem:[#allocation2 + $0x180] sm:$0xff] 0.0
      %113 = vst [vmem:[#allocation2 + $0x188] sm:$0xff] 0.0
      %114 = vst [vmem:[#allocation2 + $0x190] sm:$0xff] 0.0
      %115 = vst [vmem:[#allocation2 + $0x198] sm:$0xff] 0.0
      %116 = vst [vmem:[#allocation2 + $0x1a0] sm:$0xff] 0.0
      %117 = vst [vmem:[#allocation2 + $0x1a8] sm:$0xff] 0.0
      %118 = vst [vmem:[#allocation2 + $0x1b0] sm:$0xff] 0.0
      %119 = vst [vmem:[#allocation2 + $0x1b8] sm:$0xff] 0.0
      %120 = vst [vmem:[#allocation2 + $0x1c0] sm:$0xff] 0.0
      %121 = vst [vmem:[#allocation2 + $0x1c8] sm:$0xff] 0.0
      %122 = vst [vmem:[#allocation2 + $0x1d0] sm:$0xff] 0.0
      %123 = vst [vmem:[#allocation2 + $0x1d8] sm:$0xff] 0.0
      %124 = vst [vmem:[#allocation2 + $0x1e0] sm:$0xff] 0.0
      %125 = vst [vmem:[#allocation2 + $0x1e8] sm:$0xff] 0.0
      %126 = vst [vmem:[#allocation2 + $0x1f0] sm:$0xff] 0.0
      %127 = vst [vmem:[#allocation2 + $0x1f8] sm:$0xff] 0.0
    $region33: #{tpu_custom_call.1} parent=1 // pred_fallthru
      _
    %s128 = smul.u32 0, 512
    %s129 = sshra.s32 %s128, 3
    %s130 = sand.u32 %s128, 7
    %s131 = smul.addr %s129, 4
    %s132 = scalar_lea.vmem [#allocation6], %s131
    %v133 = vld [vmem:[%s132] sm:$0xf]
    %v134 = vld [vmem:[%s132 + $0x4] sm:$0xf]
    %v135 = vld [vmem:[%s132 + $0x8] sm:$0xf]
    %v136 = vld [vmem:[%s132 + $0xc] sm:$0xf]
    %v137 = vld [vmem:[%s132 + $0x10] sm:$0xf]
    %v138 = vld [vmem:[%s132 + $0x14] sm:$0xf]
    %v139 = vld [vmem:[%s132 + $0x18] sm:$0xf]
    %v140 = vld [vmem:[%s132 + $0x1c] sm:$0xf]
    %v141 = vld [vmem:[%s132 + $0x20] sm:$0xf]
    %v142 = vld [vmem:[%s132 + $0x24] sm:$0xf]
    %v143 = vld [vmem:[%s132 + $0x28] sm:$0xf]
    %v144 = vld [vmem:[%s132 + $0x2c] sm:$0xf]
    %v145 = vld [vmem:[%s132 + $0x30] sm:$0xf]
    %v146 = vld [vmem:[%s132 + $0x34] sm:$0xf]
    %v147 = vld [vmem:[%s132 + $0x38] sm:$0xf]
    %v148 = vld [vmem:[%s132 + $0x3c] sm:$0xf]
    %v149 = vld [vmem:[%s132 + $0x40] sm:$0xf]
    %v150 = vld [vmem:[%s132 + $0x44] sm:$0xf]
    %v151 = vld [vmem:[%s132 + $0x48] sm:$0xf]
    %v152 = vld [vmem:[%s132 + $0x4c] sm:$0xf]
    %v153 = vld [vmem:[%s132 + $0x50] sm:$0xf]
    %v154 = vld [vmem:[%s132 + $0x54] sm:$0xf]
    %v155 = vld [vmem:[%s132 + $0x58] sm:$0xf]
    %v156 = vld [vmem:[%s132 + $0x5c] sm:$0xf]
    %v157 = vld [vmem:[%s132 + $0x60] sm:$0xf]
    %v158 = vld [vmem:[%s132 + $0x64] sm:$0xf]
    %v159 = vld [vmem:[%s132 + $0x68] sm:$0xf]
    %v160 = vld [vmem:[%s132 + $0x6c] sm:$0xf]
    %v161 = vld [vmem:[%s132 + $0x70] sm:$0xf]
    %v162 = vld [vmem:[%s132 + $0x74] sm:$0xf]
    %v163 = vld [vmem:[%s132 + $0x78] sm:$0xf]
    %v164 = vld [vmem:[%s132 + $0x7c] sm:$0xf]
    %v165 = vld [vmem:[%s132 + $0x80] sm:$0xf]
    %v166 = vld [vmem:[%s132 + $0x84] sm:$0xf]
    %v167 = vld [vmem:[%s132 + $0x88] sm:$0xf]
    %v168 = vld [vmem:[%s132 + $0x8c] sm:$0xf]
    %v169 = vld [vmem:[%s132 + $0x90] sm:$0xf]
    %v170 = vld [vmem:[%s132 + $0x94] sm:$0xf]
    %v171 = vld [vmem:[%s132 + $0x98] sm:$0xf]
    %v172 = vld [vmem:[%s132 + $0x9c] sm:$0xf]
    %v173 = vld [vmem:[%s132 + $0xa0] sm:$0xf]
    %v174 = vld [vmem:[%s132 + $0xa4] sm:$0xf]
    %v175 = vld [vmem:[%s132 + $0xa8] sm:$0xf]
    %v176 = vld [vmem:[%s132 + $0xac] sm:$0xf]
    %v177 = vld [vmem:[%s132 + $0xb0] sm:$0xf]
    %v178 = vld [vmem:[%s132 + $0xb4] sm:$0xf]
    %v179 = vld [vmem:[%s132 + $0xb8] sm:$0xf]
    %v180 = vld [vmem:[%s132 + $0xbc] sm:$0xf]
    %v181 = vld [vmem:[%s132 + $0xc0] sm:$0xf]
    %v182 = vld [vmem:[%s132 + $0xc4] sm:$0xf]
    %v183 = vld [vmem:[%s132 + $0xc8] sm:$0xf]
    %v184 = vld [vmem:[%s132 + $0xcc] sm:$0xf]
    %v185 = vld [vmem:[%s132 + $0xd0] sm:$0xf]
    %v186 = vld [vmem:[%s132 + $0xd4] sm:$0xf]
    %v187 = vld [vmem:[%s132 + $0xd8] sm:$0xf]
    %v188 = vld [vmem:[%s132 + $0xdc] sm:$0xf]
    %v189 = vld [vmem:[%s132 + $0xe0] sm:$0xf]
    %v190 = vld [vmem:[%s132 + $0xe4] sm:$0xf]
    %v191 = vld [vmem:[%s132 + $0xe8] sm:$0xf]
    %v192 = vld [vmem:[%s132 + $0xec] sm:$0xf]
    %v193 = vld [vmem:[%s132 + $0xf0] sm:$0xf]
    %v194 = vld [vmem:[%s132 + $0xf4] sm:$0xf]
    %v195 = vld [vmem:[%s132 + $0xf8] sm:$0xf]
    %v196 = vld [vmem:[%s132 + $0xfc] sm:$0xf]
    %v197 = vld [vmem:[#allocation2] sm:$0xff]
    %v198 = vld [vmem:[#allocation2 + $0x8] sm:$0xff]
    %v199 = vld [vmem:[#allocation2 + $0x10] sm:$0xff]
    %v200 = vld [vmem:[#allocation2 + $0x18] sm:$0xff]
    %v201 = vld [vmem:[#allocation2 + $0x20] sm:$0xff]
    %v202 = vld [vmem:[#allocation2 + $0x28] sm:$0xff]
    %v203 = vld [vmem:[#allocation2 + $0x30] sm:$0xff]
    %v204 = vld [vmem:[#allocation2 + $0x38] sm:$0xff]
    %v205 = vld [vmem:[#allocation2 + $0x40] sm:$0xff]
    %v206 = vld [vmem:[#allocation2 + $0x48] sm:$0xff]
    %v207 = vld [vmem:[#allocation2 + $0x50] sm:$0xff]
    %v208 = vld [vmem:[#allocation2 + $0x58] sm:$0xff]
    %v209 = vld [vmem:[#allocation2 + $0x60] sm:$0xff]
    %v210 = vld [vmem:[#allocation2 + $0x68] sm:$0xff]
    %v211 = vld [vmem:[#allocation2 + $0x70] sm:$0xff]
    %v212 = vld [vmem:[#allocation2 + $0x78] sm:$0xff]
    %v213 = vld [vmem:[#allocation2 + $0x80] sm:$0xff]
    %v214 = vld [vmem:[#allocation2 + $0x88] sm:$0xff]
    %v215 = vld [vmem:[#allocation2 + $0x90] sm:$0xff]
    %v216 = vld [vmem:[#allocation2 + $0x98] sm:$0xff]
    %v217 = vld [vmem:[#allocation2 + $0xa0] sm:$0xff]
    %v218 = vld [vmem:[#allocation2 + $0xa8] sm:$0xff]
    %v219 = vld [vmem:[#allocation2 + $0xb0] sm:$0xff]
    %v220 = vld [vmem:[#allocation2 + $0xb8] sm:$0xff]
    %v221 = vld [vmem:[#allocation2 + $0xc0] sm:$0xff]
    %v222 = vld [vmem:[#allocation2 + $0xc8] sm:$0xff]
    %v223 = vld [vmem:[#allocation2 + $0xd0] sm:$0xff]
    %v224 = vld [vmem:[#allocation2 + $0xd8] sm:$0xff]
    %v225 = vld [vmem:[#allocation2 + $0xe0] sm:$0xff]
    %v226 = vld [vmem:[#allocation2 + $0xe8] sm:$0xff]
    %v227 = vld [vmem:[#allocation2 + $0xf0] sm:$0xff]
    %v228 = vld [vmem:[#allocation2 + $0xf8] sm:$0xff]
    %v229 = vld [vmem:[#allocation2 + $0x100] sm:$0xff]
    %v230 = vld [vmem:[#allocation2 + $0x108] sm:$0xff]
    %v231 = vld [vmem:[#allocation2 + $0x110] sm:$0xff]
    %v232 = vld [vmem:[#allocation2 + $0x118] sm:$0xff]
    %v233 = vld [vmem:[#allocation2 + $0x120] sm:$0xff]
    %v234 = vld [vmem:[#allocation2 + $0x128] sm:$0xff]
    %v235 = vld [vmem:[#allocation2 + $0x130] sm:$0xff]
    %v236 = vld [vmem:[#allocation2 + $0x138] sm:$0xff]
    %v237 = vld [vmem:[#allocation2 + $0x140] sm:$0xff]
    %v238 = vld [vmem:[#allocation2 + $0x148] sm:$0xff]
    %v239 = vld [vmem:[#allocation2 + $0x150] sm:$0xff]
    %v240 = vld [vmem:[#allocation2 + $0x158] sm:$0xff]
    %v241 = vld [vmem:[#allocation2 + $0x160] sm:$0xff]
    %v242 = vld [vmem:[#allocation2 + $0x168] sm:$0xff]
    %v243 = vld [vmem:[#allocation2 + $0x170] sm:$0xff]
    %v244 = vld [vmem:[#allocation2 + $0x178] sm:$0xff]
    %v245 = vld [vmem:[#allocation2 + $0x180] sm:$0xff]
    %v246 = vld [vmem:[#allocation2 + $0x188] sm:$0xff]
    %v247 = vld [vmem:[#allocation2 + $0x190] sm:$0xff]
    %v248 = vld [vmem:[#allocation2 + $0x198] sm:$0xff]
    %v249 = vld [vmem:[#allocation2 + $0x1a0] sm:$0xff]
    %v250 = vld [vmem:[#allocation2 + $0x1a8] sm:$0xff]
    %v251 = vld [vmem:[#allocation2 + $0x1b0] sm:$0xff]
    %v252 = vld [vmem:[#allocation2 + $0x1b8] sm:$0xff]
    %v253 = vld [vmem:[#allocation2 + $0x1c0] sm:$0xff]
    %v254 = vld [vmem:[#allocation2 + $0x1c8] sm:$0xff]
    %v255 = vld [vmem:[#allocation2 + $0x1d0] sm:$0xff]
    %v256 = vld [vmem:[#allocation2 + $0x1d8] sm:$0xff]
    %v257 = vld [vmem:[#allocation2 + $0x1e0] sm:$0xff]
    %v258 = vld [vmem:[#allocation2 + $0x1e8] sm:$0xff]
    %v259 = vld [vmem:[#allocation2 + $0x1f0] sm:$0xff]
    %v260 = vld [vmem:[#allocation2 + $0x1f8] sm:$0xff]
    %v261 = vld [vmem:[#allocation3] sm:$0xff]
    %v262 = vld [vmem:[#allocation3 + $0x8] sm:$0xff]
    %v263 = vld [vmem:[#allocation3 + $0x10] sm:$0xff]
    %v264 = vld [vmem:[#allocation3 + $0x18] sm:$0xff]
    %v265 = vld [vmem:[#allocation3 + $0x20] sm:$0xff]
    %v266 = vld [vmem:[#allocation3 + $0x28] sm:$0xff]
    %v267 = vld [vmem:[#allocation3 + $0x30] sm:$0xff]
    %v268 = vld [vmem:[#allocation3 + $0x38] sm:$0xff]
    %v269 = vld [vmem:[#allocation3 + $0x40] sm:$0xff]
    %v270 = vld [vmem:[#allocation3 + $0x48] sm:$0xff]
    %v271 = vld [vmem:[#allocation3 + $0x50] sm:$0xff]
    %v272 = vld [vmem:[#allocation3 + $0x58] sm:$0xff]
    %v273 = vld [vmem:[#allocation3 + $0x60] sm:$0xff]
    %v274 = vld [vmem:[#allocation3 + $0x68] sm:$0xff]
    %v275 = vld [vmem:[#allocation3 + $0x70] sm:$0xff]
    %v276 = vld [vmem:[#allocation3 + $0x78] sm:$0xff]
    %v277 = vld [vmem:[#allocation3 + $0x80] sm:$0xff]
    %v278 = vld [vmem:[#allocation3 + $0x88] sm:$0xff]
    %v279 = vld [vmem:[#allocation3 + $0x90] sm:$0xff]
    %v280 = vld [vmem:[#allocation3 + $0x98] sm:$0xff]
    %v281 = vld [vmem:[#allocation3 + $0xa0] sm:$0xff]
    %v282 = vld [vmem:[#allocation3 + $0xa8] sm:$0xff]
    %v283 = vld [vmem:[#allocation3 + $0xb0] sm:$0xff]
    %v284 = vld [vmem:[#allocation3 + $0xb8] sm:$0xff]
    %v285 = vld [vmem:[#allocation3 + $0xc0] sm:$0xff]
    %v286 = vld [vmem:[#allocation3 + $0xc8] sm:$0xff]
    %v287 = vld [vmem:[#allocation3 + $0xd0] sm:$0xff]
    %v288 = vld [vmem:[#allocation3 + $0xd8] sm:$0xff]
    %v289 = vld [vmem:[#allocation3 + $0xe0] sm:$0xff]
    %v290 = vld [vmem:[#allocation3 + $0xe8] sm:$0xff]
    %v291 = vld [vmem:[#allocation3 + $0xf0] sm:$0xff]
    %v292 = vld [vmem:[#allocation3 + $0xf8] sm:$0xff]
    %v293 = vld [vmem:[#allocation3 + $0x100] sm:$0xff]
    %v294 = vld [vmem:[#allocation3 + $0x108] sm:$0xff]
    %v295 = vld [vmem:[#allocation3 + $0x110] sm:$0xff]
    %v296 = vld [vmem:[#allocation3 + $0x118] sm:$0xff]
    %v297 = vld [vmem:[#allocation3 + $0x120] sm:$0xff]
    %v298 = vld [vmem:[#allocation3 + $0x128] sm:$0xff]
    %v299 = vld [vmem:[#allocation3 + $0x130] sm:$0xff]
    %v300 = vld [vmem:[#allocation3 + $0x138] sm:$0xff]
    %v301 = vld [vmem:[#allocation3 + $0x140] sm:$0xff]
    %v302 = vld [vmem:[#allocation3 + $0x148] sm:$0xff]
    %v303 = vld [vmem:[#allocation3 + $0x150] sm:$0xff]
    %v304 = vld [vmem:[#allocation3 + $0x158] sm:$0xff]
    %v305 = vld [vmem:[#allocation3 + $0x160] sm:$0xff]
    %v306 = vld [vmem:[#allocation3 + $0x168] sm:$0xff]
    %v307 = vld [vmem:[#allocation3 + $0x170] sm:$0xff]
    %v308 = vld [vmem:[#allocation3 + $0x178] sm:$0xff]
    %v309 = vld [vmem:[#allocation3 + $0x180] sm:$0xff]
    %v310 = vld [vmem:[#allocation3 + $0x188] sm:$0xff]
    %v311 = vld [vmem:[#allocation3 + $0x190] sm:$0xff]
    %v312 = vld [vmem:[#allocation3 + $0x198] sm:$0xff]
    %v313 = vld [vmem:[#allocation3 + $0x1a0] sm:$0xff]
    %v314 = vld [vmem:[#allocation3 + $0x1a8] sm:$0xff]
    %v315 = vld [vmem:[#allocation3 + $0x1b0] sm:$0xff]
    %v316 = vld [vmem:[#allocation3 + $0x1b8] sm:$0xff]
    %v317 = vld [vmem:[#allocation3 + $0x1c0] sm:$0xff]
    %v318 = vld [vmem:[#allocation3 + $0x1c8] sm:$0xff]
    %v319 = vld [vmem:[#allocation3 + $0x1d0] sm:$0xff]
    %v320 = vld [vmem:[#allocation3 + $0x1d8] sm:$0xff]
    %v321 = vld [vmem:[#allocation3 + $0x1e0] sm:$0xff]
    %v322 = vld [vmem:[#allocation3 + $0x1e8] sm:$0xff]
    %v323 = vld [vmem:[#allocation3 + $0x1f0] sm:$0xff]
    %v324 = vld [vmem:[#allocation3 + $0x1f8] sm:$0xff]
    %v325 = vld [vmem:[#allocation3 + $0x200] sm:$0xff]
    %v326 = vld [vmem:[#allocation3 + $0x208] sm:$0xff]
    %v327 = vld [vmem:[#allocation3 + $0x210] sm:$0xff]
    %v328 = vld [vmem:[#allocation3 + $0x218] sm:$0xff]
    %v329 = vld [vmem:[#allocation3 + $0x220] sm:$0xff]
    %v330 = vld [vmem:[#allocation3 + $0x228] sm:$0xff]
    %v331 = vld [vmem:[#allocation3 + $0x230] sm:$0xff]
    %v332 = vld [vmem:[#allocation3 + $0x238] sm:$0xff]
    %v333 = vld [vmem:[#allocation3 + $0x240] sm:$0xff]
    %v334 = vld [vmem:[#allocation3 + $0x248] sm:$0xff]
    %v335 = vld [vmem:[#allocation3 + $0x250] sm:$0xff]
    %v336 = vld [vmem:[#allocation3 + $0x258] sm:$0xff]
    %v337 = vld [vmem:[#allocation3 + $0x260] sm:$0xff]
    %v338 = vld [vmem:[#allocation3 + $0x268] sm:$0xff]
    %v339 = vld [vmem:[#allocation3 + $0x270] sm:$0xff]
    %v340 = vld [vmem:[#allocation3 + $0x278] sm:$0xff]
    %v341 = vld [vmem:[#allocation3 + $0x280] sm:$0xff]
    %v342 = vld [vmem:[#allocation3 + $0x288] sm:$0xff]
    %v343 = vld [vmem:[#allocation3 + $0x290] sm:$0xff]
    %v344 = vld [vmem:[#allocation3 + $0x298] sm:$0xff]
    %v345 = vld [vmem:[#allocation3 + $0x2a0] sm:$0xff]
    %v346 = vld [vmem:[#allocation3 + $0x2a8] sm:$0xff]
    %v347 = vld [vmem:[#allocation3 + $0x2b0] sm:$0xff]
    %v348 = vld [vmem:[#allocation3 + $0x2b8] sm:$0xff]
    %v349 = vld [vmem:[#allocation3 + $0x2c0] sm:$0xff]
    %v350 = vld [vmem:[#allocation3 + $0x2c8] sm:$0xff]
    %v351 = vld [vmem:[#allocation3 + $0x2d0] sm:$0xff]
    %v352 = vld [vmem:[#allocation3 + $0x2d8] sm:$0xff]
    %v353 = vld [vmem:[#allocation3 + $0x2e0] sm:$0xff]
    %v354 = vld [vmem:[#allocation3 + $0x2e8] sm:$0xff]
    %v355 = vld [vmem:[#allocation3 + $0x2f0] sm:$0xff]
    %v356 = vld [vmem:[#allocation3 + $0x2f8] sm:$0xff]
    %v357 = vld [vmem:[#allocation3 + $0x300] sm:$0xff]
    %v358 = vld [vmem:[#allocation3 + $0x308] sm:$0xff]
    %v359 = vld [vmem:[#allocation3 + $0x310] sm:$0xff]
    %v360 = vld [vmem:[#allocation3 + $0x318] sm:$0xff]
    %v361 = vld [vmem:[#allocation3 + $0x320] sm:$0xff]
    %v362 = vld [vmem:[#allocation3 + $0x328] sm:$0xff]
    %v363 = vld [vmem:[#allocation3 + $0x330] sm:$0xff]
    %v364 = vld [vmem:[#allocation3 + $0x338] sm:$0xff]
    %v365 = vld [vmem:[#allocation3 + $0x340] sm:$0xff]
    %v366 = vld [vmem:[#allocation3 + $0x348] sm:$0xff]
    %v367 = vld [vmem:[#allocation3 + $0x350] sm:$0xff]
    %v368 = vld [vmem:[#allocation3 + $0x358] sm:$0xff]
    %v369 = vld [vmem:[#allocation3 + $0x360] sm:$0xff]
    %v370 = vld [vmem:[#allocation3 + $0x368] sm:$0xff]
    %v371 = vld [vmem:[#allocation3 + $0x370] sm:$0xff]
    %v372 = vld [vmem:[#allocation3 + $0x378] sm:$0xff]
    %v373 = vld [vmem:[#allocation3 + $0x380] sm:$0xff]
    %v374 = vld [vmem:[#allocation3 + $0x388] sm:$0xff]
    %v375 = vld [vmem:[#allocation3 + $0x390] sm:$0xff]
    %v376 = vld [vmem:[#allocation3 + $0x398] sm:$0xff]
    %v377 = vld [vmem:[#allocation3 + $0x3a0] sm:$0xff]
    %v378 = vld [vmem:[#allocation3 + $0x3a8] sm:$0xff]
    %v379 = vld [vmem:[#allocation3 + $0x3b0] sm:$0xff]
    %v380 = vld [vmem:[#allocation3 + $0x3b8] sm:$0xff]
    %v381 = vld [vmem:[#allocation3 + $0x3c0] sm:$0xff]
    %v382 = vld [vmem:[#allocation3 + $0x3c8] sm:$0xff]
    %v383 = vld [vmem:[#allocation3 + $0x3d0] sm:$0xff]
    %v384 = vld [vmem:[#allocation3 + $0x3d8] sm:$0xff]
    %v385 = vld [vmem:[#allocation3 + $0x3e0] sm:$0xff]
    %v386 = vld [vmem:[#allocation3 + $0x3e8] sm:$0xff]
    %v387 = vld [vmem:[#allocation3 + $0x3f0] sm:$0xff]
    %v388 = vld [vmem:[#allocation3 + $0x3f8] sm:$0xff]
    %v517 = vunpack.c.l.b16 %v261
    %v518 = vunpack.c.h.b16 %v261
    %v519 = vunpack.c.l.b16 %v262
    %v520 = vunpack.c.h.b16 %v262
    %v521 = vunpack.c.l.b16 %v263
    %v522 = vunpack.c.h.b16 %v263
    %v523 = vunpack.c.l.b16 %v264
    %v524 = vunpack.c.h.b16 %v264
    %v525 = vunpack.c.l.b16 %v265
    %v526 = vunpack.c.h.b16 %v265
    %v527 = vunpack.c.l.b16 %v266
    %v528 = vunpack.c.h.b16 %v266
    %v529 = vunpack.c.l.b16 %v267
    %v530 = vunpack.c.h.b16 %v267
    %v531 = vunpack.c.l.b16 %v268
    %v532 = vunpack.c.h.b16 %v268
    %v533 = vunpack.c.l.b16 %v269
    %v534 = vunpack.c.h.b16 %v269
    %v535 = vunpack.c.l.b16 %v270
    %v536 = vunpack.c.h.b16 %v270
    %v537 = vunpack.c.l.b16 %v271
    %v538 = vunpack.c.h.b16 %v271
    %v539 = vunpack.c.l.b16 %v272
    %v540 = vunpack.c.h.b16 %v272
    %v541 = vunpack.c.l.b16 %v273
    %v542 = vunpack.c.h.b16 %v273
    %v543 = vunpack.c.l.b16 %v274
    %v544 = vunpack.c.h.b16 %v274
    %v545 = vunpack.c.l.b16 %v275
    %v546 = vunpack.c.h.b16 %v275
    %v547 = vunpack.c.l.b16 %v276
    %v548 = vunpack.c.h.b16 %v276
    %v549 = vunpack.c.l.b16 %v277
    %v550 = vunpack.c.h.b16 %v277
    %v551 = vunpack.c.l.b16 %v278
    %v552 = vunpack.c.h.b16 %v278
    %v553 = vunpack.c.l.b16 %v279
    %v554 = vunpack.c.h.b16 %v279
    %v555 = vunpack.c.l.b16 %v280
    %v556 = vunpack.c.h.b16 %v280
    %v557 = vunpack.c.l.b16 %v281
    %v558 = vunpack.c.h.b16 %v281
    %v559 = vunpack.c.l.b16 %v282
    %v560 = vunpack.c.h.b16 %v282
    %v561 = vunpack.c.l.b16 %v283
    %v562 = vunpack.c.h.b16 %v283
    %v563 = vunpack.c.l.b16 %v284
    %v564 = vunpack.c.h.b16 %v284
    %v565 = vunpack.c.l.b16 %v285
    %v566 = vunpack.c.h.b16 %v285
    %v567 = vunpack.c.l.b16 %v286
    %v568 = vunpack.c.h.b16 %v286
    %v569 = vunpack.c.l.b16 %v287
    %v570 = vunpack.c.h.b16 %v287
    %v571 = vunpack.c.l.b16 %v288
    %v572 = vunpack.c.h.b16 %v288
    %v573 = vunpack.c.l.b16 %v289
    %v574 = vunpack.c.h.b16 %v289
    %v575 = vunpack.c.l.b16 %v290
    %v576 = vunpack.c.h.b16 %v290
    %v577 = vunpack.c.l.b16 %v291
    %v578 = vunpack.c.h.b16 %v291
    %v579 = vunpack.c.l.b16 %v292
    %v580 = vunpack.c.h.b16 %v292
    %v581 = vunpack.c.l.b16 %v293
    %v582 = vunpack.c.h.b16 %v293
    %v583 = vunpack.c.l.b16 %v294
    %v584 = vunpack.c.h.b16 %v294
    %v585 = vunpack.c.l.b16 %v295
    %v586 = vunpack.c.h.b16 %v295
    %v587 = vunpack.c.l.b16 %v296
    %v588 = vunpack.c.h.b16 %v296
    %v589 = vunpack.c.l.b16 %v297
    %v590 = vunpack.c.h.b16 %v297
    %v591 = vunpack.c.l.b16 %v298
    %v592 = vunpack.c.h.b16 %v298
    %v593 = vunpack.c.l.b16 %v299
    %v594 = vunpack.c.h.b16 %v299
    %v595 = vunpack.c.l.b16 %v300
    %v596 = vunpack.c.h.b16 %v300
    %v597 = vunpack.c.l.b16 %v301
    %v598 = vunpack.c.h.b16 %v301
    %v599 = vunpack.c.l.b16 %v302
    %v600 = vunpack.c.h.b16 %v302
    %v601 = vunpack.c.l.b16 %v303
    %v602 = vunpack.c.h.b16 %v303
    %v603 = vunpack.c.l.b16 %v304
    %v604 = vunpack.c.h.b16 %v304
    %v605 = vunpack.c.l.b16 %v305
    %v606 = vunpack.c.h.b16 %v305
    %v607 = vunpack.c.l.b16 %v306
    %v608 = vunpack.c.h.b16 %v306
    %v609 = vunpack.c.l.b16 %v307
    %v610 = vunpack.c.h.b16 %v307
    %v611 = vunpack.c.l.b16 %v308
    %v612 = vunpack.c.h.b16 %v308
    %v613 = vunpack.c.l.b16 %v309
    %v614 = vunpack.c.h.b16 %v309
    %v615 = vunpack.c.l.b16 %v310
    %v616 = vunpack.c.h.b16 %v310
    %v617 = vunpack.c.l.b16 %v311
    %v618 = vunpack.c.h.b16 %v311
    %v619 = vunpack.c.l.b16 %v312
    %v620 = vunpack.c.h.b16 %v312
    %v621 = vunpack.c.l.b16 %v313
    %v622 = vunpack.c.h.b16 %v313
    %v623 = vunpack.c.l.b16 %v314
    %v624 = vunpack.c.h.b16 %v314
    %v625 = vunpack.c.l.b16 %v315
    %v626 = vunpack.c.h.b16 %v315
    %v627 = vunpack.c.l.b16 %v316
    %v628 = vunpack.c.h.b16 %v316
    %v629 = vunpack.c.l.b16 %v317
    %v630 = vunpack.c.h.b16 %v317
    %v631 = vunpack.c.l.b16 %v318
    %v632 = vunpack.c.h.b16 %v318
    %v633 = vunpack.c.l.b16 %v319
    %v634 = vunpack.c.h.b16 %v319
    %v635 = vunpack.c.l.b16 %v320
    %v636 = vunpack.c.h.b16 %v320
    %v637 = vunpack.c.l.b16 %v321
    %v638 = vunpack.c.h.b16 %v321
    %v639 = vunpack.c.l.b16 %v322
    %v640 = vunpack.c.h.b16 %v322
    %v641 = vunpack.c.l.b16 %v323
    %v642 = vunpack.c.h.b16 %v323
    %v643 = vunpack.c.l.b16 %v324
    %v644 = vunpack.c.h.b16 %v324
    %v645 = vunpack.c.l.b16 %v325
    %v646 = vunpack.c.h.b16 %v325
    %v647 = vunpack.c.l.b16 %v326
    %v648 = vunpack.c.h.b16 %v326
    %v649 = vunpack.c.l.b16 %v327
    %v650 = vunpack.c.h.b16 %v327
    %v651 = vunpack.c.l.b16 %v328
    %v652 = vunpack.c.h.b16 %v328
    %v653 = vunpack.c.l.b16 %v329
    %v654 = vunpack.c.h.b16 %v329
    %v655 = vunpack.c.l.b16 %v330
    %v656 = vunpack.c.h.b16 %v330
    %v657 = vunpack.c.l.b16 %v331
    %v658 = vunpack.c.h.b16 %v331
    %v659 = vunpack.c.l.b16 %v332
    %v660 = vunpack.c.h.b16 %v332
    %v661 = vunpack.c.l.b16 %v333
    %v662 = vunpack.c.h.b16 %v333
    %v663 = vunpack.c.l.b16 %v334
    %v664 = vunpack.c.h.b16 %v334
    %v665 = vunpack.c.l.b16 %v335
    %v666 = vunpack.c.h.b16 %v335
    %v667 = vunpack.c.l.b16 %v336
    %v668 = vunpack.c.h.b16 %v336
    %v669 = vunpack.c.l.b16 %v337
    %v670 = vunpack.c.h.b16 %v337
    %v671 = vunpack.c.l.b16 %v338
    %v672 = vunpack.c.h.b16 %v338
    %v673 = vunpack.c.l.b16 %v339
    %v674 = vunpack.c.h.b16 %v339
    %v675 = vunpack.c.l.b16 %v340
    %v676 = vunpack.c.h.b16 %v340
    %v677 = vunpack.c.l.b16 %v341
    %v678 = vunpack.c.h.b16 %v341
    %v679 = vunpack.c.l.b16 %v342
    %v680 = vunpack.c.h.b16 %v342
    %v681 = vunpack.c.l.b16 %v343
    %v682 = vunpack.c.h.b16 %v343
    %v683 = vunpack.c.l.b16 %v344
    %v684 = vunpack.c.h.b16 %v344
    %v685 = vunpack.c.l.b16 %v345
    %v686 = vunpack.c.h.b16 %v345
    %v687 = vunpack.c.l.b16 %v346
    %v688 = vunpack.c.h.b16 %v346
    %v689 = vunpack.c.l.b16 %v347
    %v690 = vunpack.c.h.b16 %v347
    %v691 = vunpack.c.l.b16 %v348
    %v692 = vunpack.c.h.b16 %v348
    %v693 = vunpack.c.l.b16 %v349
    %v694 = vunpack.c.h.b16 %v349
    %v695 = vunpack.c.l.b16 %v350
    %v696 = vunpack.c.h.b16 %v350
    %v697 = vunpack.c.l.b16 %v351
    %v698 = vunpack.c.h.b16 %v351
    %v699 = vunpack.c.l.b16 %v352
    %v700 = vunpack.c.h.b16 %v352
    %v701 = vunpack.c.l.b16 %v353
    %v702 = vunpack.c.h.b16 %v353
    %v703 = vunpack.c.l.b16 %v354
    %v704 = vunpack.c.h.b16 %v354
    %v705 = vunpack.c.l.b16 %v355
    %v706 = vunpack.c.h.b16 %v355
    %v707 = vunpack.c.l.b16 %v356
    %v708 = vunpack.c.h.b16 %v356
    %v709 = vunpack.c.l.b16 %v357
    %v710 = vunpack.c.h.b16 %v357
    %v711 = vunpack.c.l.b16 %v358
    %v712 = vunpack.c.h.b16 %v358
    %v713 = vunpack.c.l.b16 %v359
    %v714 = vunpack.c.h.b16 %v359
    %v715 = vunpack.c.l.b16 %v360
    %v716 = vunpack.c.h.b16 %v360
    %v717 = vunpack.c.l.b16 %v361
    %v718 = vunpack.c.h.b16 %v361
    %v719 = vunpack.c.l.b16 %v362
    %v720 = vunpack.c.h.b16 %v362
    %v721 = vunpack.c.l.b16 %v363
    %v722 = vunpack.c.h.b16 %v363
    %v723 = vunpack.c.l.b16 %v364
    %v724 = vunpack.c.h.b16 %v364
    %v725 = vunpack.c.l.b16 %v365
    %v726 = vunpack.c.h.b16 %v365
    %v727 = vunpack.c.l.b16 %v366
    %v728 = vunpack.c.h.b16 %v366
    %v729 = vunpack.c.l.b16 %v367
    %v730 = vunpack.c.h.b16 %v367
    %v731 = vunpack.c.l.b16 %v368
    %v732 = vunpack.c.h.b16 %v368
    %v733 = vunpack.c.l.b16 %v369
    %v734 = vunpack.c.h.b16 %v369
    %v735 = vunpack.c.l.b16 %v370
    %v736 = vunpack.c.h.b16 %v370
    %v737 = vunpack.c.l.b16 %v371
    %v738 = vunpack.c.h.b16 %v371
    %v739 = vunpack.c.l.b16 %v372
    %v740 = vunpack.c.h.b16 %v372
    %v741 = vunpack.c.l.b16 %v373
    %v742 = vunpack.c.h.b16 %v373
    %v743 = vunpack.c.l.b16 %v374
    %v744 = vunpack.c.h.b16 %v374
    %v745 = vunpack.c.l.b16 %v375
    %v746 = vunpack.c.h.b16 %v375
    %v747 = vunpack.c.l.b16 %v376
    %v748 = vunpack.c.h.b16 %v376
    %v749 = vunpack.c.l.b16 %v377
    %v750 = vunpack.c.h.b16 %v377
    %v751 = vunpack.c.l.b16 %v378
    %v752 = vunpack.c.h.b16 %v378
    %v753 = vunpack.c.l.b16 %v379
    %v754 = vunpack.c.h.b16 %v379
    %v755 = vunpack.c.l.b16 %v380
    %v756 = vunpack.c.h.b16 %v380
    %v757 = vunpack.c.l.b16 %v381
    %v758 = vunpack.c.h.b16 %v381
    %v759 = vunpack.c.l.b16 %v382
    %v760 = vunpack.c.h.b16 %v382
    %v761 = vunpack.c.l.b16 %v383
    %v762 = vunpack.c.h.b16 %v383
    %v763 = vunpack.c.l.b16 %v384
    %v764 = vunpack.c.h.b16 %v384
    %v765 = vunpack.c.l.b16 %v385
    %v766 = vunpack.c.h.b16 %v385
    %v767 = vunpack.c.l.b16 %v386
    %v768 = vunpack.c.h.b16 %v386
    %v769 = vunpack.c.l.b16 %v387
    %v770 = vunpack.c.h.b16 %v387
    %v771 = vunpack.c.l.b16 %v388
    %v772 = vunpack.c.h.b16 %v388
    %v773 = vpack.c.b16 %v521, %v517
    %v774 = vpack.c.b16 %v522, %v518
    %v775 = vpack.c.b16 %v523, %v519
    %v776 = vpack.c.b16 %v524, %v520
    %v777 = vpack.c.b16 %v529, %v525
    %v778 = vpack.c.b16 %v530, %v526
    %v779 = vpack.c.b16 %v531, %v527
    %v780 = vpack.c.b16 %v532, %v528
    %v781 = vpack.c.b16 %v537, %v533
    %v782 = vpack.c.b16 %v538, %v534
    %v783 = vpack.c.b16 %v539, %v535
    %v784 = vpack.c.b16 %v540, %v536
    %v785 = vpack.c.b16 %v545, %v541
    %v786 = vpack.c.b16 %v546, %v542
    %v787 = vpack.c.b16 %v547, %v543
    %v788 = vpack.c.b16 %v548, %v544
    %v789 = vpack.c.b16 %v553, %v549
    %v790 = vpack.c.b16 %v554, %v550
    %v791 = vpack.c.b16 %v555, %v551
    %v792 = vpack.c.b16 %v556, %v552
    %v793 = vpack.c.b16 %v561, %v557
    %v794 = vpack.c.b16 %v562, %v558
    %v795 = vpack.c.b16 %v563, %v559
    %v796 = vpack.c.b16 %v564, %v560
    %v797 = vpack.c.b16 %v569, %v565
    %v798 = vpack.c.b16 %v570, %v566
    %v799 = vpack.c.b16 %v571, %v567
    %v800 = vpack.c.b16 %v572, %v568
    %v801 = vpack.c.b16 %v577, %v573
    %v802 = vpack.c.b16 %v578, %v574
    %v803 = vpack.c.b16 %v579, %v575
    %v804 = vpack.c.b16 %v580, %v576
    %v805 = vpack.c.b16 %v585, %v581
    %v806 = vpack.c.b16 %v586, %v582
    %v807 = vpack.c.b16 %v587, %v583
    %v808 = vpack.c.b16 %v588, %v584
    %v809 = vpack.c.b16 %v593, %v589
    %v810 = vpack.c.b16 %v594, %v590
    %v811 = vpack.c.b16 %v595, %v591
    %v812 = vpack.c.b16 %v596, %v592
    %v813 = vpack.c.b16 %v601, %v597
    %v814 = vpack.c.b16 %v602, %v598
    %v815 = vpack.c.b16 %v603, %v599
    %v816 = vpack.c.b16 %v604, %v600
    %v817 = vpack.c.b16 %v609, %v605
    %v818 = vpack.c.b16 %v610, %v606
    %v819 = vpack.c.b16 %v611, %v607
    %v820 = vpack.c.b16 %v612, %v608
    %v821 = vpack.c.b16 %v617, %v613
    %v822 = vpack.c.b16 %v618, %v614
    %v823 = vpack.c.b16 %v619, %v615
    %v824 = vpack.c.b16 %v620, %v616
    %v825 = vpack.c.b16 %v625, %v621
    %v826 = vpack.c.b16 %v626, %v622
    %v827 = vpack.c.b16 %v627, %v623
    %v828 = vpack.c.b16 %v628, %v624
    %v829 = vpack.c.b16 %v633, %v629
    %v830 = vpack.c.b16 %v634, %v630
    %v831 = vpack.c.b16 %v635, %v631
    %v832 = vpack.c.b16 %v636, %v632
    %v833 = vpack.c.b16 %v641, %v637
    %v834 = vpack.c.b16 %v642, %v638
    %v835 = vpack.c.b16 %v643, %v639
    %v836 = vpack.c.b16 %v644, %v640
    %v837 = vpack.c.b16 %v649, %v645
    %v838 = vpack.c.b16 %v650, %v646
    %v839 = vpack.c.b16 %v651, %v647
    %v840 = vpack.c.b16 %v652, %v648
    %v841 = vpack.c.b16 %v657, %v653
    %v842 = vpack.c.b16 %v658, %v654
    %v843 = vpack.c.b16 %v659, %v655
    %v844 = vpack.c.b16 %v660, %v656
    %v845 = vpack.c.b16 %v665, %v661
    %v846 = vpack.c.b16 %v666, %v662
    %v847 = vpack.c.b16 %v667, %v663
    %v848 = vpack.c.b16 %v668, %v664
    %v849 = vpack.c.b16 %v673, %v669
    %v850 = vpack.c.b16 %v674, %v670
    %v851 = vpack.c.b16 %v675, %v671
    %v852 = vpack.c.b16 %v676, %v672
    %v853 = vpack.c.b16 %v681, %v677
    %v854 = vpack.c.b16 %v682, %v678
    %v855 = vpack.c.b16 %v683, %v679
    %v856 = vpack.c.b16 %v684, %v680
    %v857 = vpack.c.b16 %v689, %v685
    %v858 = vpack.c.b16 %v690, %v686
    %v859 = vpack.c.b16 %v691, %v687
    %v860 = vpack.c.b16 %v692, %v688
    %v861 = vpack.c.b16 %v697, %v693
    %v862 = vpack.c.b16 %v698, %v694
    %v863 = vpack.c.b16 %v699, %v695
    %v864 = vpack.c.b16 %v700, %v696
    %v865 = vpack.c.b16 %v705, %v701
    %v866 = vpack.c.b16 %v706, %v702
    %v867 = vpack.c.b16 %v707, %v703
    %v868 = vpack.c.b16 %v708, %v704
    %v869 = vpack.c.b16 %v713, %v709
    %v870 = vpack.c.b16 %v714, %v710
    %v871 = vpack.c.b16 %v715, %v711
    %v872 = vpack.c.b16 %v716, %v712
    %v873 = vpack.c.b16 %v721, %v717
    %v874 = vpack.c.b16 %v722, %v718
    %v875 = vpack.c.b16 %v723, %v719
    %v876 = vpack.c.b16 %v724, %v720
    %v877 = vpack.c.b16 %v729, %v725
    %v878 = vpack.c.b16 %v730, %v726
    %v879 = vpack.c.b16 %v731, %v727
    %v880 = vpack.c.b16 %v732, %v728
    %v881 = vpack.c.b16 %v737, %v733
    %v882 = vpack.c.b16 %v738, %v734
    %v883 = vpack.c.b16 %v739, %v735
    %v884 = vpack.c.b16 %v740, %v736
    %v885 = vpack.c.b16 %v745, %v741
    %v886 = vpack.c.b16 %v746, %v742
    %v887 = vpack.c.b16 %v747, %v743
    %v888 = vpack.c.b16 %v748, %v744
    %v889 = vpack.c.b16 %v753, %v749
    %v890 = vpack.c.b16 %v754, %v750
    %v891 = vpack.c.b16 %v755, %v751
    %v892 = vpack.c.b16 %v756, %v752
    %v893 = vpack.c.b16 %v761, %v757
    %v894 = vpack.c.b16 %v762, %v758
    %v895 = vpack.c.b16 %v763, %v759
    %v896 = vpack.c.b16 %v764, %v760
    %v897 = vpack.c.b16 %v769, %v765
    %v898 = vpack.c.b16 %v770, %v766
    %v899 = vpack.c.b16 %v771, %v767
    %v900 = vpack.c.b16 %v772, %v768
    %v1093 = vunpack.c.l.b16 %v133
    %v1094 = vunpack.c.l.b16 %v134
    %v1095 = vunpack.c.l.b16 %v135
    %v1096 = vunpack.c.l.b16 %v136
    %v1097 = vunpack.c.l.b16 %v137
    %v1098 = vunpack.c.l.b16 %v138
    %v1099 = vunpack.c.l.b16 %v139
    %v1100 = vunpack.c.l.b16 %v140
    %v1101 = vunpack.c.l.b16 %v141
    %v1102 = vunpack.c.l.b16 %v142
    %v1103 = vunpack.c.l.b16 %v143
    %v1104 = vunpack.c.l.b16 %v144
    %v1105 = vunpack.c.l.b16 %v145
    %v1106 = vunpack.c.l.b16 %v146
    %v1107 = vunpack.c.l.b16 %v147
    %v1108 = vunpack.c.l.b16 %v148
    %v1109 = vunpack.c.l.b16 %v149
    %v1110 = vunpack.c.l.b16 %v150
    %v1111 = vunpack.c.l.b16 %v151
    %v1112 = vunpack.c.l.b16 %v152
    %v1113 = vunpack.c.l.b16 %v153
    %v1114 = vunpack.c.l.b16 %v154
    %v1115 = vunpack.c.l.b16 %v155
    %v1116 = vunpack.c.l.b16 %v156
    %v1117 = vunpack.c.l.b16 %v157
    %v1118 = vunpack.c.l.b16 %v158
    %v1119 = vunpack.c.l.b16 %v159
    %v1120 = vunpack.c.l.b16 %v160
    %v1121 = vunpack.c.l.b16 %v161
    %v1122 = vunpack.c.l.b16 %v162
    %v1123 = vunpack.c.l.b16 %v163
    %v1124 = vunpack.c.l.b16 %v164
    %v1125 = vunpack.c.l.b16 %v165
    %v1126 = vunpack.c.l.b16 %v166
    %v1127 = vunpack.c.l.b16 %v167
    %v1128 = vunpack.c.l.b16 %v168
    %v1129 = vunpack.c.l.b16 %v169
    %v1130 = vunpack.c.l.b16 %v170
    %v1131 = vunpack.c.l.b16 %v171
    %v1132 = vunpack.c.l.b16 %v172
    %v1133 = vunpack.c.l.b16 %v173
    %v1134 = vunpack.c.l.b16 %v174
    %v1135 = vunpack.c.l.b16 %v175
    %v1136 = vunpack.c.l.b16 %v176
    %v1137 = vunpack.c.l.b16 %v177
    %v1138 = vunpack.c.l.b16 %v178
    %v1139 = vunpack.c.l.b16 %v179
    %v1140 = vunpack.c.l.b16 %v180
    %v1141 = vunpack.c.l.b16 %v181
    %v1142 = vunpack.c.l.b16 %v182
    %v1143 = vunpack.c.l.b16 %v183
    %v1144 = vunpack.c.l.b16 %v184
    %v1145 = vunpack.c.l.b16 %v185
    %v1146 = vunpack.c.l.b16 %v186
    %v1147 = vunpack.c.l.b16 %v187
    %v1148 = vunpack.c.l.b16 %v188
    %v1149 = vunpack.c.l.b16 %v189
    %v1150 = vunpack.c.l.b16 %v190
    %v1151 = vunpack.c.l.b16 %v191
    %v1152 = vunpack.c.l.b16 %v192
    %v1153 = vunpack.c.l.b16 %v193
    %v1154 = vunpack.c.l.b16 %v194
    %v1155 = vunpack.c.l.b16 %v195
    %v1156 = vunpack.c.l.b16 %v196
    %v1157 = vpack.c.b16 %v1094, %v1093
    %v1158 = vpack.c.b16 %v1096, %v1095
    %v1159 = vpack.c.b16 %v1098, %v1097
    %v1160 = vpack.c.b16 %v1100, %v1099
    %v1161 = vpack.c.b16 %v1102, %v1101
    %v1162 = vpack.c.b16 %v1104, %v1103
    %v1163 = vpack.c.b16 %v1106, %v1105
    %v1164 = vpack.c.b16 %v1108, %v1107
    %v1165 = vpack.c.b16 %v1110, %v1109
    %v1166 = vpack.c.b16 %v1112, %v1111
    %v1167 = vpack.c.b16 %v1114, %v1113
    %v1168 = vpack.c.b16 %v1116, %v1115
    %v1169 = vpack.c.b16 %v1118, %v1117
    %v1170 = vpack.c.b16 %v1120, %v1119
    %v1171 = vpack.c.b16 %v1122, %v1121
    %v1172 = vpack.c.b16 %v1124, %v1123
    %v1173 = vpack.c.b16 %v1126, %v1125
    %v1174 = vpack.c.b16 %v1128, %v1127
    %v1175 = vpack.c.b16 %v1130, %v1129
    %v1176 = vpack.c.b16 %v1132, %v1131
    %v1177 = vpack.c.b16 %v1134, %v1133
    %v1178 = vpack.c.b16 %v1136, %v1135
    %v1179 = vpack.c.b16 %v1138, %v1137
    %v1180 = vpack.c.b16 %v1140, %v1139
    %v1181 = vpack.c.b16 %v1142, %v1141
    %v1182 = vpack.c.b16 %v1144, %v1143
    %v1183 = vpack.c.b16 %v1146, %v1145
    %v1184 = vpack.c.b16 %v1148, %v1147
    %v1185 = vpack.c.b16 %v1150, %v1149
    %v1186 = vpack.c.b16 %v1152, %v1151
    %v1187 = vpack.c.b16 %v1154, %v1153
    %v1188 = vpack.c.b16 %v1156, %v1155
    %1221 = vmatprep.subr.bf16.mxu0 0
    %1222 = vmatpush1.bf16.msra.mxu0 %v1157
    %1223 = vmatprep.subr.bf16.mxu0 0
    %1224 = vmatpush1.bf16.msra.mxu0 %v1158
    %1225 = vmatprep.subr.bf16.mxu0 0
    %1226 = vmatpush1.bf16.msra.mxu0 %v1159
    %1227 = vmatprep.subr.bf16.mxu0 0
    %1228 = vmatpush1.bf16.msra.mxu0 %v1160
    %1229 = vmatprep.subr.bf16.mxu0 0
    %1230 = vmatpush1.bf16.msra.mxu0 %v1161
    %1231 = vmatprep.subr.bf16.mxu0 0
    %1232 = vmatpush1.bf16.msra.mxu0 %v1162
    %1233 = vmatprep.subr.bf16.mxu0 0
    %1234 = vmatpush1.bf16.msra.mxu0 %v1163
    %1235 = vmatprep.subr.bf16.mxu0 0
    %1236 = vmatpush1.bf16.msra.mxu0 %v1164
    %1237 = vmatprep.subr.bf16.mxu0 0
    %1238 = vmatpush1.bf16.msra.mxu0 %v1165
    %1239 = vmatprep.subr.bf16.mxu0 0
    %1240 = vmatpush1.bf16.msra.mxu0 %v1166
    %1241 = vmatprep.subr.bf16.mxu0 0
    %1242 = vmatpush1.bf16.msra.mxu0 %v1167
    %1243 = vmatprep.subr.bf16.mxu0 0
    %1244 = vmatpush1.bf16.msra.mxu0 %v1168
    %1245 = vmatprep.subr.bf16.mxu0 0
    %1246 = vmatpush1.bf16.msra.mxu0 %v1169
    %1247 = vmatprep.subr.bf16.mxu0 0
    %1248 = vmatpush1.bf16.msra.mxu0 %v1170
    %1249 = vmatprep.subr.bf16.mxu0 0
    %1250 = vmatpush1.bf16.msra.mxu0 %v1171
    %1251 = vmatprep.subr.bf16.mxu0 0
    %1252 = vmatpush1.bf16.msra.mxu0 %v1172
    %1253 = vmatprep.mubr.bf16.mxu0 %v774
    %1254 = vmatmul.mubr.bf16.gmra.mrb[0].mxu0 %v773
    %v1255 = vpop.f32.mrb[0].mxu0
    %v1256 = vadd.f32 0.0, %v1255
    %v1257 = vpop.f32.mrb[0].mxu0
    %v1258 = vpop.f32.mrb[0].mxu0
    %v1259 = vadd.f32 0.0, %v1258
    %v1260 = vpop.f32.mrb[0].mxu0
    %1261 = vmatprep.mubr.bf16.mxu0 %v778
    %1262 = vmatmul.mubr.bf16.gmra.mrb[0].mxu0 %v777
    %v1263 = vpop.f32.mrb[0].mxu0
    %v1264 = vadd.f32 0.0, %v1263
    %v1265 = vpop.f32.mrb[0].mxu0
    %v1266 = vpop.f32.mrb[0].mxu0
    %v1267 = vadd.f32 0.0, %v1266
    %v1268 = vpop.f32.mrb[0].mxu0
    %1269 = vmatprep.mubr.bf16.mxu0 %v782
    %1270 = vmatmul.mubr.bf16.gmra.mrb[0].mxu0 %v781
    %v1271 = vpop.f32.mrb[0].mxu0
    %v1272 = vadd.f32 0.0, %v1271
    %v1273 = vpop.f32.mrb[0].mxu0
    %v1274 = vpop.f32.mrb[0].mxu0
    %v1275 = vadd.f32 0.0, %v1274
    %v1276 = vpop.f32.mrb[0].mxu0
    %1277 = vmatprep.mubr.bf16.mxu0 %v786
    %1278 = vmatmul.mubr.bf16.gmra.mrb[0].mxu0 %v785
    %v1279 = vpop.f32.mrb[0].mxu0
    %v1280 = vadd.f32 0.0, %v1279
    %v1281 = vpop.f32.mrb[0].mxu0
    %v1282 = vpop.f32.mrb[0].mxu0
    %v1283 = vadd.f32 0.0, %v1282
    %v1284 = vpop.f32.mrb[0].mxu0
    %1285 = vmatprep.mubr.bf16.mxu0 %v790
    %1286 = vmatmul.mubr.bf16.gmra.mrb[0].mxu0 %v789
    %v1287 = vpop.f32.mrb[0].mxu0
    %v1288 = vadd.f32 0.0, %v1287
    %v1289 = vpop.f32.mrb[0].mxu0
    %v1290 = vpop.f32.mrb[0].mxu0
    %v1291 = vadd.f32 0.0, %v1290
    %v1292 = vpop.f32.mrb[0].mxu0
    %1293 = vmatprep.mubr.bf16.mxu0 %v794
    %1294 = vmatmul.mubr.bf16.gmra.mrb[0].mxu0 %v793
    %v1295 = vpop.f32.mrb[0].mxu0
    %v1296 = vadd.f32 0.0, %v1295
    %v1297 = vpop.f32.mrb[0].mxu0
    %v1298 = vpop.f32.mrb[0].mxu0
    %v1299 = vadd.f32 0.0, %v1298
    %v1300 = vpop.f32.mrb[0].mxu0
    %1301 = vmatprep.mubr.bf16.mxu0 %v798
    %1302 = vmatmul.mubr.bf16.gmra.mrb[0].mxu0 %v797
    %v1303 = vpop.f32.mrb[0].mxu0
    %v1304 = vadd.f32 0.0, %v1303
    %v1305 = vpop.f32.mrb[0].mxu0
    %v1306 = vpop.f32.mrb[0].mxu0
    %v1307 = vadd.f32 0.0, %v1306
    %v1308 = vpop.f32.mrb[0].mxu0
    %1309 = vmatprep.mubr.bf16.mxu0 %v802
    %1310 = vmatmul.mubr.bf16.gmra.mrb[0].mxu0 %v801
    %v1311 = vpop.f32.mrb[0].mxu0
    %v1312 = vadd.f32 0.0, %v1311
    %v1313 = vpop.f32.mrb[0].mxu0
    %v1314 = vpop.f32.mrb[0].mxu0
    %v1315 = vadd.f32 0.0, %v1314
    %v1316 = vpop.f32.mrb[0].mxu0
    %1317 = vmatprep.mubr.bf16.mxu0 %v806
    %1318 = vmatmul.mubr.bf16.gmra.mrb[0].mxu0 %v805
    %v1319 = vpop.f32.mrb[0].mxu0
    %v1320 = vadd.f32 0.0, %v1319
    %v1321 = vpop.f32.mrb[0].mxu0
    %v1322 = vpop.f32.mrb[0].mxu0
    %v1323 = vadd.f32 0.0, %v1322
    %v1324 = vpop.f32.mrb[0].mxu0
    %1325 = vmatprep.mubr.bf16.mxu0 %v810
    %1326 = vmatmul.mubr.bf16.gmra.mrb[0].mxu0 %v809
    %v1327 = vpop.f32.mrb[0].mxu0
    %v1328 = vadd.f32 0.0, %v1327
    %v1329 = vpop.f32.mrb[0].mxu0
    %v1330 = vpop.f32.mrb[0].mxu0
    %v1331 = vadd.f32 0.0, %v1330
    %v1332 = vpop.f32.mrb[0].mxu0
    %1333 = vmatprep.mubr.bf16.mxu0 %v814
    %1334 = vmatmul.mubr.bf16.gmra.mrb[0].mxu0 %v813
    %v1335 = vpop.f32.mrb[0].mxu0
    %v1336 = vadd.f32 0.0, %v1335
    %v1337 = vpop.f32.mrb[0].mxu0
    %v1338 = vpop.f32.mrb[0].mxu0
    %v1339 = vadd.f32 0.0, %v1338
    %v1340 = vpop.f32.mrb[0].mxu0
    %1341 = vmatprep.mubr.bf16.mxu0 %v818
    %1342 = vmatmul.mubr.bf16.gmra.mrb[0].mxu0 %v817
    %v1343 = vpop.f32.mrb[0].mxu0
    %v1344 = vadd.f32 0.0, %v1343
    %v1345 = vpop.f32.mrb[0].mxu0
    %v1346 = vpop.f32.mrb[0].mxu0
    %v1347 = vadd.f32 0.0, %v1346
    %v1348 = vpop.f32.mrb[0].mxu0
    %1349 = vmatprep.mubr.bf16.mxu0 %v822
    %1350 = vmatmul.mubr.bf16.gmra.mrb[0].mxu0 %v821
    %v1351 = vpop.f32.mrb[0].mxu0
    %v1352 = vadd.f32 0.0, %v1351
    %v1353 = vpop.f32.mrb[0].mxu0
    %v1354 = vpop.f32.mrb[0].mxu0
    %v1355 = vadd.f32 0.0, %v1354
    %v1356 = vpop.f32.mrb[0].mxu0
    %1357 = vmatprep.mubr.bf16.mxu0 %v826
    %1358 = vmatmul.mubr.bf16.gmra.mrb[0].mxu0 %v825
    %v1359 = vpop.f32.mrb[0].mxu0
    %v1360 = vadd.f32 0.0, %v1359
    %v1361 = vpop.f32.mrb[0].mxu0
    %v1362 = vpop.f32.mrb[0].mxu0
    %v1363 = vadd.f32 0.0, %v1362
    %v1364 = vpop.f32.mrb[0].mxu0
    %1365 = vmatprep.mubr.bf16.mxu0 %v830
    %1366 = vmatmul.mubr.bf16.gmra.mrb[0].mxu0 %v829
    %v1367 = vpop.f32.mrb[0].mxu0
    %v1368 = vadd.f32 0.0, %v1367
    %v1369 = vpop.f32.mrb[0].mxu0
    %v1370 = vpop.f32.mrb[0].mxu0
    %v1371 = vadd.f32 0.0, %v1370
    %v1372 = vpop.f32.mrb[0].mxu0
    %1373 = vmatprep.mubr.bf16.mxu0 %v834
    %1374 = vmatmul.mubr.bf16.gmra.mrb[0].mxu0 %v833
    %v1375 = vpop.f32.mrb[0].mxu0
    %v1376 = vadd.f32 0.0, %v1375
    %v1377 = vpop.f32.mrb[0].mxu0
    %v1378 = vpop.f32.mrb[0].mxu0
    %v1379 = vadd.f32 0.0, %v1378
    %v1380 = vpop.f32.mrb[0].mxu0
    %1381 = vmatprep.mubr.bf16.mxu0 %v838
    %1382 = vmatmul.mubr.bf16.gmra.mrb[0].mxu0 %v837
    %v1383 = vpop.f32.mrb[0].mxu0
    %v1384 = vadd.f32 0.0, %v1383
    %v1385 = vpop.f32.mrb[0].mxu0
    %v1386 = vpop.f32.mrb[0].mxu0
    %v1387 = vadd.f32 0.0, %v1386
    %v1388 = vpop.f32.mrb[0].mxu0
    %1389 = vmatprep.mubr.bf16.mxu0 %v842
    %1390 = vmatmul.mubr.bf16.gmra.mrb[0].mxu0 %v841
    %v1391 = vpop.f32.mrb[0].mxu0
    %v1392 = vadd.f32 0.0, %v1391
    %v1393 = vpop.f32.mrb[0].mxu0
    %v1394 = vpop.f32.mrb[0].mxu0
    %v1395 = vadd.f32 0.0, %v1394
    %v1396 = vpop.f32.mrb[0].mxu0
    %1397 = vmatprep.mubr.bf16.mxu0 %v846
    %1398 = vmatmul.mubr.bf16.gmra.mrb[0].mxu0 %v845
    %v1399 = vpop.f32.mrb[0].mxu0
    %v1400 = vadd.f32 0.0, %v1399
    %v1401 = vpop.f32.mrb[0].mxu0
    %v1402 = vpop.f32.mrb[0].mxu0
    %v1403 = vadd.f32 0.0, %v1402
    %v1404 = vpop.f32.mrb[0].mxu0
    %1405 = vmatprep.mubr.bf16.mxu0 %v850
    %1406 = vmatmul.mubr.bf16.gmra.mrb[0].mxu0 %v849
    %v1407 = vpop.f32.mrb[0].mxu0
    %v1408 = vadd.f32 0.0, %v1407
    %v1409 = vpop.f32.mrb[0].mxu0
    %v1410 = vpop.f32.mrb[0].mxu0
    %v1411 = vadd.f32 0.0, %v1410
    %v1412 = vpop.f32.mrb[0].mxu0
    %1413 = vmatprep.mubr.bf16.mxu0 %v854
    %1414 = vmatmul.mubr.bf16.gmra.mrb[0].mxu0 %v853
    %v1415 = vpop.f32.mrb[0].mxu0
    %v1416 = vadd.f32 0.0, %v1415
    %v1417 = vpop.f32.mrb[0].mxu0
    %v1418 = vpop.f32.mrb[0].mxu0
    %v1419 = vadd.f32 0.0, %v1418
    %v1420 = vpop.f32.mrb[0].mxu0
    %1421 = vmatprep.mubr.bf16.mxu0 %v858
    %1422 = vmatmul.mubr.bf16.gmra.mrb[0].mxu0 %v857
    %v1423 = vpop.f32.mrb[0].mxu0
    %v1424 = vadd.f32 0.0, %v1423
    %v1425 = vpop.f32.mrb[0].mxu0
    %v1426 = vpop.f32.mrb[0].mxu0
    %v1427 = vadd.f32 0.0, %v1426
    %v1428 = vpop.f32.mrb[0].mxu0
    %1429 = vmatprep.mubr.bf16.mxu0 %v862
    %1430 = vmatmul.mubr.bf16.gmra.mrb[0].mxu0 %v861
    %v1431 = vpop.f32.mrb[0].mxu0
    %v1432 = vadd.f32 0.0, %v1431
    %v1433 = vpop.f32.mrb[0].mxu0
    %v1434 = vpop.f32.mrb[0].mxu0
    %v1435 = vadd.f32 0.0, %v1434
    %v1436 = vpop.f32.mrb[0].mxu0
    %1437 = vmatprep.mubr.bf16.mxu0 %v866
    %1438 = vmatmul.mubr.bf16.gmra.mrb[0].mxu0 %v865
    %v1439 = vpop.f32.mrb[0].mxu0
    %v1440 = vadd.f32 0.0, %v1439
    %v1441 = vpop.f32.mrb[0].mxu0
    %v1442 = vpop.f32.mrb[0].mxu0
    %v1443 = vadd.f32 0.0, %v1442
    %v1444 = vpop.f32.mrb[0].mxu0
    %1445 = vmatprep.mubr.bf16.mxu0 %v870
    %1446 = vmatmul.mubr.bf16.gmra.mrb[0].mxu0 %v869
    %v1447 = vpop.f32.mrb[0].mxu0
    %v1448 = vadd.f32 0.0, %v1447
    %v1449 = vpop.f32.mrb[0].mxu0
    %v1450 = vpop.f32.mrb[0].mxu0
    %v1451 = vadd.f32 0.0, %v1450
    %v1452 = vpop.f32.mrb[0].mxu0
    %1453 = vmatprep.mubr.bf16.mxu0 %v874
    %1454 = vmatmul.mubr.bf16.gmra.mrb[0].mxu0 %v873
    %v1455 = vpop.f32.mrb[0].mxu0
    %v1456 = vadd.f32 0.0, %v1455
    %v1457 = vpop.f32.mrb[0].mxu0
    %v1458 = vpop.f32.mrb[0].mxu0
    %v1459 = vadd.f32 0.0, %v1458
    %v1460 = vpop.f32.mrb[0].mxu0
    %1461 = vmatprep.mubr.bf16.mxu0 %v878
    %1462 = vmatmul.mubr.bf16.gmra.mrb[0].mxu0 %v877
    %v1463 = vpop.f32.mrb[0].mxu0
    %v1464 = vadd.f32 0.0, %v1463
    %v1465 = vpop.f32.mrb[0].mxu0
    %v1466 = vpop.f32.mrb[0].mxu0
    %v1467 = vadd.f32 0.0, %v1466
    %v1468 = vpop.f32.mrb[0].mxu0
    %1469 = vmatprep.mubr.bf16.mxu0 %v882
    %1470 = vmatmul.mubr.bf16.gmra.mrb[0].mxu0 %v881
    %v1471 = vpop.f32.mrb[0].mxu0
    %v1472 = vadd.f32 0.0, %v1471
    %v1473 = vpop.f32.mrb[0].mxu0
    %v1474 = vpop.f32.mrb[0].mxu0
    %v1475 = vadd.f32 0.0, %v1474
    %v1476 = vpop.f32.mrb[0].mxu0
    %1477 = vmatprep.mubr.bf16.mxu0 %v886
    %1478 = vmatmul.mubr.bf16.gmra.mrb[0].mxu0 %v885
    %v1479 = vpop.f32.mrb[0].mxu0
    %v1480 = vadd.f32 0.0, %v1479
    %v1481 = vpop.f32.mrb[0].mxu0
    %v1482 = vpop.f32.mrb[0].mxu0
    %v1483 = vadd.f32 0.0, %v1482
    %v1484 = vpop.f32.mrb[0].mxu0
    %1485 = vmatprep.mubr.bf16.mxu0 %v890
    %1486 = vmatmul.mubr.bf16.gmra.mrb[0].mxu0 %v889
    %v1487 = vpop.f32.mrb[0].mxu0
    %v1488 = vadd.f32 0.0, %v1487
    %v1489 = vpop.f32.mrb[0].mxu0
    %v1490 = vpop.f32.mrb[0].mxu0
    %v1491 = vadd.f32 0.0, %v1490
    %v1492 = vpop.f32.mrb[0].mxu0
    %1493 = vmatprep.mubr.bf16.mxu0 %v894
    %1494 = vmatmul.mubr.bf16.gmra.mrb[0].mxu0 %v893
    %v1495 = vpop.f32.mrb[0].mxu0
    %v1496 = vadd.f32 0.0, %v1495
    %v1497 = vpop.f32.mrb[0].mxu0
    %v1498 = vpop.f32.mrb[0].mxu0
    %v1499 = vadd.f32 0.0, %v1498
    %v1500 = vpop.f32.mrb[0].mxu0
    %1501 = vmatprep.mubr.bf16.mxu0 %v898
    %1502 = vmatmul.mubr.bf16.gmra.mrb[0].mxu0 %v897
    %v1503 = vpop.f32.mrb[0].mxu0
    %v1504 = vadd.f32 0.0, %v1503
    %v1505 = vpop.f32.mrb[0].mxu0
    %v1506 = vpop.f32.mrb[0].mxu0
    %v1507 = vadd.f32 0.0, %v1506
    %v1508 = vpop.f32.mrb[0].mxu0
    %1509 = vdwg.mxu0
    %1510 = vmatprep.subr.bf16.mxu0 0
    %1511 = vmatpush1.bf16.msra.mxu0 %v1173
    %1512 = vmatprep.subr.bf16.mxu0 0
    %1513 = vmatpush1.bf16.msra.mxu0 %v1174
    %1514 = vmatprep.subr.bf16.mxu0 0
    %1515 = vmatpush1.bf16.msra.mxu0 %v1175
    %1516 = vmatprep.subr.bf16.mxu0 0
    %1517 = vmatpush1.bf16.msra.mxu0 %v1176
    %1518 = vmatprep.subr.bf16.mxu0 0
    %1519 = vmatpush1.bf16.msra.mxu0 %v1177
    %1520 = vmatprep.subr.bf16.mxu0 0
    %1521 = vmatpush1.bf16.msra.mxu0 %v1178
    %1522 = vmatprep.subr.bf16.mxu0 0
    %1523 = vmatpush1.bf16.msra.mxu0 %v1179
    %1524 = vmatprep.subr.bf16.mxu0 0
    %1525 = vmatpush1.bf16.msra.mxu0 %v1180
    %1526 = vmatprep.subr.bf16.mxu0 0
    %1527 = vmatpush1.bf16.msra.mxu0 %v1181
    %1528 = vmatprep.subr.bf16.mxu0 0
    %1529 = vmatpush1.bf16.msra.mxu0 %v1182
    %1530 = vmatprep.subr.bf16.mxu0 0
    %1531 = vmatpush1.bf16.msra.mxu0 %v1183
    %1532 = vmatprep.subr.bf16.mxu0 0
    %1533 = vmatpush1.bf16.msra.mxu0 %v1184
    %1534 = vmatprep.subr.bf16.mxu0 0
    %1535 = vmatpush1.bf16.msra.mxu0 %v1185
    %1536 = vmatprep.subr.bf16.mxu0 0
    %1537 = vmatpush1.bf16.msra.mxu0 %v1186
    %1538 = vmatprep.subr.bf16.mxu0 0
    %1539 = vmatpush1.bf16.msra.mxu0 %v1187
    %1540 = vmatprep.subr.bf16.mxu0 0
    %1541 = vmatpush1.bf16.msra.mxu0 %v1188
    %1542 = vmatprep.mubr.bf16.mxu0 %v776
    %1543 = vmatmul.mubr.bf16.gmra.mrb[0].mxu0 %v775
    %v1544 = vpop.f32.mrb[0].mxu0
    %v1545 = vadd.f32 %v1256, %v1544
    %v1546 = vpop.f32.mrb[0].mxu0
    %v1547 = vpop.f32.mrb[0].mxu0
    %v1548 = vadd.f32 %v1259, %v1547
    %v1549 = vpop.f32.mrb[0].mxu0
    %1550 = vmatprep.mubr.bf16.mxu0 %v780
    %1551 = vmatmul.mubr.bf16.gmra.mrb[0].mxu0 %v779
    %v1552 = vpop.f32.mrb[0].mxu0
    %v1553 = vadd.f32 %v1264, %v1552
    %v1554 = vpop.f32.mrb[0].mxu0
    %v1555 = vpop.f32.mrb[0].mxu0
    %v1556 = vadd.f32 %v1267, %v1555
    %v1557 = vpop.f32.mrb[0].mxu0
    %1558 = vmatprep.mubr.bf16.mxu0 %v784
    %1559 = vmatmul.mubr.bf16.gmra.mrb[0].mxu0 %v783
    %v1560 = vpop.f32.mrb[0].mxu0
    %v1561 = vadd.f32 %v1272, %v1560
    %v1562 = vpop.f32.mrb[0].mxu0
    %v1563 = vpop.f32.mrb[0].mxu0
    %v1564 = vadd.f32 %v1275, %v1563
    %v1565 = vpop.f32.mrb[0].mxu0
    %1566 = vmatprep.mubr.bf16.mxu0 %v788
    %1567 = vmatmul.mubr.bf16.gmra.mrb[0].mxu0 %v787
    %v1568 = vpop.f32.mrb[0].mxu0
    %v1569 = vadd.f32 %v1280, %v1568
    %v1570 = vpop.f32.mrb[0].mxu0
    %v1571 = vpop.f32.mrb[0].mxu0
    %v1572 = vadd.f32 %v1283, %v1571
    %v1573 = vpop.f32.mrb[0].mxu0
    %1574 = vmatprep.mubr.bf16.mxu0 %v792
    %1575 = vmatmul.mubr.bf16.gmra.mrb[0].mxu0 %v791
    %v1576 = vpop.f32.mrb[0].mxu0
    %v1577 = vadd.f32 %v1288, %v1576
    %v1578 = vpop.f32.mrb[0].mxu0
    %v1579 = vpop.f32.mrb[0].mxu0
    %v1580 = vadd.f32 %v1291, %v1579
    %v1581 = vpop.f32.mrb[0].mxu0
    %1582 = vmatprep.mubr.bf16.mxu0 %v796
    %1583 = vmatmul.mubr.bf16.gmra.mrb[0].mxu0 %v795
    %v1584 = vpop.f32.mrb[0].mxu0
    %v1585 = vadd.f32 %v1296, %v1584
    %v1586 = vpop.f32.mrb[0].mxu0
    %v1587 = vpop.f32.mrb[0].mxu0
    %v1588 = vadd.f32 %v1299, %v1587
    %v1589 = vpop.f32.mrb[0].mxu0
    %1590 = vmatprep.mubr.bf16.mxu0 %v800
    %1591 = vmatmul.mubr.bf16.gmra.mrb[0].mxu0 %v799
    %v1592 = vpop.f32.mrb[0].mxu0
    %v1593 = vadd.f32 %v1304, %v1592
    %v1594 = vpop.f32.mrb[0].mxu0
    %v1595 = vpop.f32.mrb[0].mxu0
    %v1596 = vadd.f32 %v1307, %v1595
    %v1597 = vpop.f32.mrb[0].mxu0
    %1598 = vmatprep.mubr.bf16.mxu0 %v804
    %1599 = vmatmul.mubr.bf16.gmra.mrb[0].mxu0 %v803
    %v1600 = vpop.f32.mrb[0].mxu0
    %v1601 = vadd.f32 %v1312, %v1600
    %v1602 = vpop.f32.mrb[0].mxu0
    %v1603 = vpop.f32.mrb[0].mxu0
    %v1604 = vadd.f32 %v1315, %v1603
    %v1605 = vpop.f32.mrb[0].mxu0
    %1606 = vmatprep.mubr.bf16.mxu0 %v808
    %1607 = vmatmul.mubr.bf16.gmra.mrb[0].mxu0 %v807
    %v1608 = vpop.f32.mrb[0].mxu0
    %v1609 = vadd.f32 %v1320, %v1608
    %v1610 = vpop.f32.mrb[0].mxu0
    %v1611 = vpop.f32.mrb[0].mxu0
    %v1612 = vadd.f32 %v1323, %v1611
    %v1613 = vpop.f32.mrb[0].mxu0
    %1614 = vmatprep.mubr.bf16.mxu0 %v812
    %1615 = vmatmul.mubr.bf16.gmra.mrb[0].mxu0 %v811
    %v1616 = vpop.f32.mrb[0].mxu0
    %v1617 = vadd.f32 %v1328, %v1616
    %v1618 = vpop.f32.mrb[0].mxu0
    %v1619 = vpop.f32.mrb[0].mxu0
    %v1620 = vadd.f32 %v1331, %v1619
    %v1621 = vpop.f32.mrb[0].mxu0
    %1622 = vmatprep.mubr.bf16.mxu0 %v816
    %1623 = vmatmul.mubr.bf16.gmra.mrb[0].mxu0 %v815
    %v1624 = vpop.f32.mrb[0].mxu0
    %v1625 = vadd.f32 %v1336, %v1624
    %v1626 = vpop.f32.mrb[0].mxu0
    %v1627 = vpop.f32.mrb[0].mxu0
    %v1628 = vadd.f32 %v1339, %v1627
    %v1629 = vpop.f32.mrb[0].mxu0
    %1630 = vmatprep.mubr.bf16.mxu0 %v820
    %1631 = vmatmul.mubr.bf16.gmra.mrb[0].mxu0 %v819
    %v1632 = vpop.f32.mrb[0].mxu0
    %v1633 = vadd.f32 %v1344, %v1632
    %v1634 = vpop.f32.mrb[0].mxu0
    %v1635 = vpop.f32.mrb[0].mxu0
    %v1636 = vadd.f32 %v1347, %v1635
    %v1637 = vpop.f32.mrb[0].mxu0
    %1638 = vmatprep.mubr.bf16.mxu0 %v824
    %1639 = vmatmul.mubr.bf16.gmra.mrb[0].mxu0 %v823
    %v1640 = vpop.f32.mrb[0].mxu0
    %v1641 = vadd.f32 %v1352, %v1640
    %v1642 = vpop.f32.mrb[0].mxu0
    %v1643 = vpop.f32.mrb[0].mxu0
    %v1644 = vadd.f32 %v1355, %v1643
    %v1645 = vpop.f32.mrb[0].mxu0
    %1646 = vmatprep.mubr.bf16.mxu0 %v828
    %1647 = vmatmul.mubr.bf16.gmra.mrb[0].mxu0 %v827
    %v1648 = vpop.f32.mrb[0].mxu0
    %v1649 = vadd.f32 %v1360, %v1648
    %v1650 = vpop.f32.mrb[0].mxu0
    %v1651 = vpop.f32.mrb[0].mxu0
    %v1652 = vadd.f32 %v1363, %v1651
    %v1653 = vpop.f32.mrb[0].mxu0
    %1654 = vmatprep.mubr.bf16.mxu0 %v832
    %1655 = vmatmul.mubr.bf16.gmra.mrb[0].mxu0 %v831
    %v1656 = vpop.f32.mrb[0].mxu0
    %v1657 = vadd.f32 %v1368, %v1656
    %v1658 = vpop.f32.mrb[0].mxu0
    %v1659 = vpop.f32.mrb[0].mxu0
    %v1660 = vadd.f32 %v1371, %v1659
    %v1661 = vpop.f32.mrb[0].mxu0
    %1662 = vmatprep.mubr.bf16.mxu0 %v836
    %1663 = vmatmul.mubr.bf16.gmra.mrb[0].mxu0 %v835
    %v1664 = vpop.f32.mrb[0].mxu0
    %v1665 = vadd.f32 %v1376, %v1664
    %v1666 = vpop.f32.mrb[0].mxu0
    %v1667 = vpop.f32.mrb[0].mxu0
    %v1668 = vadd.f32 %v1379, %v1667
    %v1669 = vpop.f32.mrb[0].mxu0
    %1670 = vmatprep.mubr.bf16.mxu0 %v840
    %1671 = vmatmul.mubr.bf16.gmra.mrb[0].mxu0 %v839
    %v1672 = vpop.f32.mrb[0].mxu0
    %v1673 = vadd.f32 %v1384, %v1672
    %v1674 = vpop.f32.mrb[0].mxu0
    %v1675 = vpop.f32.mrb[0].mxu0
    %v1676 = vadd.f32 %v1387, %v1675
    %v1677 = vpop.f32.mrb[0].mxu0
    %1678 = vmatprep.mubr.bf16.mxu0 %v844
    %1679 = vmatmul.mubr.bf16.gmra.mrb[0].mxu0 %v843
    %v1680 = vpop.f32.mrb[0].mxu0
    %v1681 = vadd.f32 %v1392, %v1680
    %v1682 = vpop.f32.mrb[0].mxu0
    %v1683 = vpop.f32.mrb[0].mxu0
    %v1684 = vadd.f32 %v1395, %v1683
    %v1685 = vpop.f32.mrb[0].mxu0
    %1686 = vmatprep.mubr.bf16.mxu0 %v848
    %1687 = vmatmul.mubr.bf16.gmra.mrb[0].mxu0 %v847
    %v1688 = vpop.f32.mrb[0].mxu0
    %v1689 = vadd.f32 %v1400, %v1688
    %v1690 = vpop.f32.mrb[0].mxu0
    %v1691 = vpop.f32.mrb[0].mxu0
    %v1692 = vadd.f32 %v1403, %v1691
    %v1693 = vpop.f32.mrb[0].mxu0
    %1694 = vmatprep.mubr.bf16.mxu0 %v852
    %1695 = vmatmul.mubr.bf16.gmra.mrb[0].mxu0 %v851
    %v1696 = vpop.f32.mrb[0].mxu0
    %v1697 = vadd.f32 %v1408, %v1696
    %v1698 = vpop.f32.mrb[0].mxu0
    %v1699 = vpop.f32.mrb[0].mxu0
    %v1700 = vadd.f32 %v1411, %v1699
    %v1701 = vpop.f32.mrb[0].mxu0
    %1702 = vmatprep.mubr.bf16.mxu0 %v856
    %1703 = vmatmul.mubr.bf16.gmra.mrb[0].mxu0 %v855
    %v1704 = vpop.f32.mrb[0].mxu0
    %v1705 = vadd.f32 %v1416, %v1704
    %v1706 = vpop.f32.mrb[0].mxu0
    %v1707 = vpop.f32.mrb[0].mxu0
    %v1708 = vadd.f32 %v1419, %v1707
    %v1709 = vpop.f32.mrb[0].mxu0
    %1710 = vmatprep.mubr.bf16.mxu0 %v860
    %1711 = vmatmul.mubr.bf16.gmra.mrb[0].mxu0 %v859
    %v1712 = vpop.f32.mrb[0].mxu0
    %v1713 = vadd.f32 %v1424, %v1712
    %v1714 = vpop.f32.mrb[0].mxu0
    %v1715 = vpop.f32.mrb[0].mxu0
    %v1716 = vadd.f32 %v1427, %v1715
    %v1717 = vpop.f32.mrb[0].mxu0
    %1718 = vmatprep.mubr.bf16.mxu0 %v864
    %1719 = vmatmul.mubr.bf16.gmra.mrb[0].mxu0 %v863
    %v1720 = vpop.f32.mrb[0].mxu0
    %v1721 = vadd.f32 %v1432, %v1720
    %v1722 = vpop.f32.mrb[0].mxu0
    %v1723 = vpop.f32.mrb[0].mxu0
    %v1724 = vadd.f32 %v1435, %v1723
    %v1725 = vpop.f32.mrb[0].mxu0
    %1726 = vmatprep.mubr.bf16.mxu0 %v868
    %1727 = vmatmul.mubr.bf16.gmra.mrb[0].mxu0 %v867
    %v1728 = vpop.f32.mrb[0].mxu0
    %v1729 = vadd.f32 %v1440, %v1728
    %v1730 = vpop.f32.mrb[0].mxu0
    %v1731 = vpop.f32.mrb[0].mxu0
    %v1732 = vadd.f32 %v1443, %v1731
    %v1733 = vpop.f32.mrb[0].mxu0
    %1734 = vmatprep.mubr.bf16.mxu0 %v872
    %1735 = vmatmul.mubr.bf16.gmra.mrb[0].mxu0 %v871
    %v1736 = vpop.f32.mrb[0].mxu0
    %v1737 = vadd.f32 %v1448, %v1736
    %v1738 = vpop.f32.mrb[0].mxu0
    %v1739 = vpop.f32.mrb[0].mxu0
    %v1740 = vadd.f32 %v1451, %v1739
    %v1741 = vpop.f32.mrb[0].mxu0
    %1742 = vmatprep.mubr.bf16.mxu0 %v876
    %1743 = vmatmul.mubr.bf16.gmra.mrb[0].mxu0 %v875
    %v1744 = vpop.f32.mrb[0].mxu0
    %v1745 = vadd.f32 %v1456, %v1744
    %v1746 = vpop.f32.mrb[0].mxu0
    %v1747 = vpop.f32.mrb[0].mxu0
    %v1748 = vadd.f32 %v1459, %v1747
    %v1749 = vpop.f32.mrb[0].mxu0
    %1750 = vmatprep.mubr.bf16.mxu0 %v880
    %1751 = vmatmul.mubr.bf16.gmra.mrb[0].mxu0 %v879
    %v1752 = vpop.f32.mrb[0].mxu0
    %v1753 = vadd.f32 %v1464, %v1752
    %v1754 = vpop.f32.mrb[0].mxu0
    %v1755 = vpop.f32.mrb[0].mxu0
    %v1756 = vadd.f32 %v1467, %v1755
    %v1757 = vpop.f32.mrb[0].mxu0
    %1758 = vmatprep.mubr.bf16.mxu0 %v884
    %1759 = vmatmul.mubr.bf16.gmra.mrb[0].mxu0 %v883
    %v1760 = vpop.f32.mrb[0].mxu0
    %v1761 = vadd.f32 %v1472, %v1760
    %v1762 = vpop.f32.mrb[0].mxu0
    %v1763 = vpop.f32.mrb[0].mxu0
    %v1764 = vadd.f32 %v1475, %v1763
    %v1765 = vpop.f32.mrb[0].mxu0
    %1766 = vmatprep.mubr.bf16.mxu0 %v888
    %1767 = vmatmul.mubr.bf16.gmra.mrb[0].mxu0 %v887
    %v1768 = vpop.f32.mrb[0].mxu0
    %v1769 = vadd.f32 %v1480, %v1768
    %v1770 = vpop.f32.mrb[0].mxu0
    %v1771 = vpop.f32.mrb[0].mxu0
    %v1772 = vadd.f32 %v1483, %v1771
    %v1773 = vpop.f32.mrb[0].mxu0
    %1774 = vmatprep.mubr.bf16.mxu0 %v892
    %1775 = vmatmul.mubr.bf16.gmra.mrb[0].mxu0 %v891
    %v1776 = vpop.f32.mrb[0].mxu0
    %v1777 = vadd.f32 %v1488, %v1776
    %v1778 = vpop.f32.mrb[0].mxu0
    %v1779 = vpop.f32.mrb[0].mxu0
    %v1780 = vadd.f32 %v1491, %v1779
    %v1781 = vpop.f32.mrb[0].mxu0
    %1782 = vmatprep.mubr.bf16.mxu0 %v896
    %1783 = vmatmul.mubr.bf16.gmra.mrb[0].mxu0 %v895
    %v1784 = vpop.f32.mrb[0].mxu0
    %v1785 = vadd.f32 %v1496, %v1784
    %v1786 = vpop.f32.mrb[0].mxu0
    %v1787 = vpop.f32.mrb[0].mxu0
    %v1788 = vadd.f32 %v1499, %v1787
    %v1789 = vpop.f32.mrb[0].mxu0
    %1790 = vmatprep.mubr.bf16.mxu0 %v900
    %1791 = vmatmul.mubr.bf16.gmra.mrb[0].mxu0 %v899
    %v1792 = vpop.f32.mrb[0].mxu0
    %v1793 = vadd.f32 %v1504, %v1792
    %v1794 = vpop.f32.mrb[0].mxu0
    %v1795 = vpop.f32.mrb[0].mxu0
    %v1796 = vadd.f32 %v1507, %v1795
    %v1797 = vpop.f32.mrb[0].mxu0
    %1798 = vdwg.mxu0
    %v1799 = vadd.f32 %v197, %v1545
    %v1800 = vadd.f32 %v198, %v1548
    %v1801 = vadd.f32 %v199, %v1553
    %v1802 = vadd.f32 %v200, %v1556
    %v1803 = vadd.f32 %v201, %v1561
    %v1804 = vadd.f32 %v202, %v1564
    %v1805 = vadd.f32 %v203, %v1569
    %v1806 = vadd.f32 %v204, %v1572
    %v1807 = vadd.f32 %v205, %v1577
    %v1808 = vadd.f32 %v206, %v1580
    %v1809 = vadd.f32 %v207, %v1585
    %v1810 = vadd.f32 %v208, %v1588
    %v1811 = vadd.f32 %v209, %v1593
    %v1812 = vadd.f32 %v210, %v1596
    %v1813 = vadd.f32 %v211, %v1601
    %v1814 = vadd.f32 %v212, %v1604
    %v1815 = vadd.f32 %v213, %v1609
    %v1816 = vadd.f32 %v214, %v1612
    %v1817 = vadd.f32 %v215, %v1617
    %v1818 = vadd.f32 %v216, %v1620
    %v1819 = vadd.f32 %v217, %v1625
    %v1820 = vadd.f32 %v218, %v1628
    %v1821 = vadd.f32 %v219, %v1633
    %v1822 = vadd.f32 %v220, %v1636
    %v1823 = vadd.f32 %v221, %v1641
    %v1824 = vadd.f32 %v222, %v1644
    %v1825 = vadd.f32 %v223, %v1649
    %v1826 = vadd.f32 %v224, %v1652
    %v1827 = vadd.f32 %v225, %v1657
    %v1828 = vadd.f32 %v226, %v1660
    %v1829 = vadd.f32 %v227, %v1665
    %v1830 = vadd.f32 %v228, %v1668
    %v1831 = vadd.f32 %v229, %v1673
    %v1832 = vadd.f32 %v230, %v1676
    %v1833 = vadd.f32 %v231, %v1681
    %v1834 = vadd.f32 %v232, %v1684
    %v1835 = vadd.f32 %v233, %v1689
    %v1836 = vadd.f32 %v234, %v1692
    %v1837 = vadd.f32 %v235, %v1697
    %v1838 = vadd.f32 %v236, %v1700
    %v1839 = vadd.f32 %v237, %v1705
    %v1840 = vadd.f32 %v238, %v1708
    %v1841 = vadd.f32 %v239, %v1713
    %v1842 = vadd.f32 %v240, %v1716
    %v1843 = vadd.f32 %v241, %v1721
    %v1844 = vadd.f32 %v242, %v1724
    %v1845 = vadd.f32 %v243, %v1729
    %v1846 = vadd.f32 %v244, %v1732
    %v1847 = vadd.f32 %v245, %v1737
    %v1848 = vadd.f32 %v246, %v1740
    %v1849 = vadd.f32 %v247, %v1745
    %v1850 = vadd.f32 %v248, %v1748
    %v1851 = vadd.f32 %v249, %v1753
    %v1852 = vadd.f32 %v250, %v1756
    %v1853 = vadd.f32 %v251, %v1761
    %v1854 = vadd.f32 %v252, %v1764
    %v1855 = vadd.f32 %v253, %v1769
    %v1856 = vadd.f32 %v254, %v1772
    %v1857 = vadd.f32 %v255, %v1777
    %v1858 = vadd.f32 %v256, %v1780
    %v1859 = vadd.f32 %v257, %v1785
    %v1860 = vadd.f32 %v258, %v1788
    %v1861 = vadd.f32 %v259, %v1793
    %v1862 = vadd.f32 %v260, %v1796
    %1863 = vst [vmem:[#allocation2] sm:$0xff] %v1799
    %1864 = vst [vmem:[#allocation2 + $0x8] sm:$0xff] %v1800
    %1865 = vst [vmem:[#allocation2 + $0x10] sm:$0xff] %v1801
    %1866 = vst [vmem:[#allocation2 + $0x18] sm:$0xff] %v1802
    %1867 = vst [vmem:[#allocation2 + $0x20] sm:$0xff] %v1803
    %1868 = vst [vmem:[#allocation2 + $0x28] sm:$0xff] %v1804
    %1869 = vst [vmem:[#allocation2 + $0x30] sm:$0xff] %v1805
    %1870 = vst [vmem:[#allocation2 + $0x38] sm:$0xff] %v1806
    %1871 = vst [vmem:[#allocation2 + $0x40] sm:$0xff] %v1807
    %1872 = vst [vmem:[#allocation2 + $0x48] sm:$0xff] %v1808
    %1873 = vst [vmem:[#allocation2 + $0x50] sm:$0xff] %v1809
    %1874 = vst [vmem:[#allocation2 + $0x58] sm:$0xff] %v1810
    %1875 = vst [vmem:[#allocation2 + $0x60] sm:$0xff] %v1811
    %1876 = vst [vmem:[#allocation2 + $0x68] sm:$0xff] %v1812
    %1877 = vst [vmem:[#allocation2 + $0x70] sm:$0xff] %v1813
    %1878 = vst [vmem:[#allocation2 + $0x78] sm:$0xff] %v1814
    %1879 = vst [vmem:[#allocation2 + $0x80] sm:$0xff] %v1815
    %1880 = vst [vmem:[#allocation2 + $0x88] sm:$0xff] %v1816
    %1881 = vst [vmem:[#allocation2 + $0x90] sm:$0xff] %v1817
    %1882 = vst [vmem:[#allocation2 + $0x98] sm:$0xff] %v1818
    %1883 = vst [vmem:[#allocation2 + $0xa0] sm:$0xff] %v1819
    %1884 = vst [vmem:[#allocation2 + $0xa8] sm:$0xff] %v1820
    %1885 = vst [vmem:[#allocation2 + $0xb0] sm:$0xff] %v1821
    %1886 = vst [vmem:[#allocation2 + $0xb8] sm:$0xff] %v1822
    %1887 = vst [vmem:[#allocation2 + $0xc0] sm:$0xff] %v1823
    %1888 = vst [vmem:[#allocation2 + $0xc8] sm:$0xff] %v1824
    %1889 = vst [vmem:[#allocation2 + $0xd0] sm:$0xff] %v1825
    %1890 = vst [vmem:[#allocation2 + $0xd8] sm:$0xff] %v1826
    %1891 = vst [vmem:[#allocation2 + $0xe0] sm:$0xff] %v1827
    %1892 = vst [vmem:[#allocation2 + $0xe8] sm:$0xff] %v1828
    %1893 = vst [vmem:[#allocation2 + $0xf0] sm:$0xff] %v1829
    %1894 = vst [vmem:[#allocation2 + $0xf8] sm:$0xff] %v1830
    %1895 = vst [vmem:[#allocation2 + $0x100] sm:$0xff] %v1831
    %1896 = vst [vmem:[#allocation2 + $0x108] sm:$0xff] %v1832
    %1897 = vst [vmem:[#allocation2 + $0x110] sm:$0xff] %v1833
    %1898 = vst [vmem:[#allocation2 + $0x118] sm:$0xff] %v1834
    %1899 = vst [vmem:[#allocation2 + $0x120] sm:$0xff] %v1835
    %1900 = vst [vmem:[#allocation2 + $0x128] sm:$0xff] %v1836
    %1901 = vst [vmem:[#allocation2 + $0x130] sm:$0xff] %v1837
    %1902 = vst [vmem:[#allocation2 + $0x138] sm:$0xff] %v1838
    %1903 = vst [vmem:[#allocation2 + $0x140] sm:$0xff] %v1839
    %1904 = vst [vmem:[#allocation2 + $0x148] sm:$0xff] %v1840
    %1905 = vst [vmem:[#allocation2 + $0x150] sm:$0xff] %v1841
    %1906 = vst [vmem:[#allocation2 + $0x158] sm:$0xff] %v1842
    %1907 = vst [vmem:[#allocation2 + $0x160] sm:$0xff] %v1843
    %1908 = vst [vmem:[#allocation2 + $0x168] sm:$0xff] %v1844
    %1909 = vst [vmem:[#allocation2 + $0x170] sm:$0xff] %v1845
    %1910 = vst [vmem:[#allocation2 + $0x178] sm:$0xff] %v1846
    %1911 = vst [vmem:[#allocation2 + $0x180] sm:$0xff] %v1847
    %1912 = vst [vmem:[#allocation2 + $0x188] sm:$0xff] %v1848
    %1913 = vst [vmem:[#allocation2 + $0x190] sm:$0xff] %v1849
    %1914 = vst [vmem:[#allocation2 + $0x198] sm:$0xff] %v1850
    %1915 = vst [vmem:[#allocation2 + $0x1a0] sm:$0xff] %v1851
    %1916 = vst [vmem:[#allocation2 + $0x1a8] sm:$0xff] %v1852
    %1917 = vst [vmem:[#allocation2 + $0x1b0] sm:$0xff] %v1853
    %1918 = vst [vmem:[#allocation2 + $0x1b8] sm:$0xff] %v1854
    %1919 = vst [vmem:[#allocation2 + $0x1c0] sm:$0xff] %v1855
    %1920 = vst [vmem:[#allocation2 + $0x1c8] sm:$0xff] %v1856
    %1921 = vst [vmem:[#allocation2 + $0x1d0] sm:$0xff] %v1857
    %1922 = vst [vmem:[#allocation2 + $0x1d8] sm:$0xff] %v1858
    %1923 = vst [vmem:[#allocation2 + $0x1e0] sm:$0xff] %v1859
    %1924 = vst [vmem:[#allocation2 + $0x1e8] sm:$0xff] %v1860
    %1925 = vst [vmem:[#allocation2 + $0x1f0] sm:$0xff] %v1861
    %1926 = vst [vmem:[#allocation2 + $0x1f8] sm:$0xff] %v1862
    // Predicated region
    $region34: #{tpu_custom_call.1} parent=1 // pred_check
      %p1927 = pneg %p60
    $region35: #{tpu_custom_call.1} parent=1 // pred_check_branch
      %1929 = sbr.rel (%p1927) target = $region37
    $region36: #{tpu_custom_call.1} parent=1 // pred_region
      %v1930 = vld [vmem:[#allocation2] sm:$0xff]
      %v1931 = vld [vmem:[#allocation2 + $0x8] sm:$0xff]
      %v1932 = vld [vmem:[#allocation2 + $0x10] sm:$0xff]
      %v1933 = vld [vmem:[#allocation2 + $0x18] sm:$0xff]
      %v1934 = vld [vmem:[#allocation2 + $0x20] sm:$0xff]
      %v1935 = vld [vmem:[#allocation2 + $0x28] sm:$0xff]
      %v1936 = vld [vmem:[#allocation2 + $0x30] sm:$0xff]
      %v1937 = vld [vmem:[#allocation2 + $0x38] sm:$0xff]
      %v1938 = vld [vmem:[#allocation2 + $0x40] sm:$0xff]
      %v1939 = vld [vmem:[#allocation2 + $0x48] sm:$0xff]
      %v1940 = vld [vmem:[#allocation2 + $0x50] sm:$0xff]
      %v1941 = vld [vmem:[#allocation2 + $0x58] sm:$0xff]
      %v1942 = vld [vmem:[#allocation2 + $0x60] sm:$0xff]
      %v1943 = vld [vmem:[#allocation2 + $0x68] sm:$0xff]
      %v1944 = vld [vmem:[#allocation2 + $0x70] sm:$0xff]
      %v1945 = vld [vmem:[#allocation2 + $0x78] sm:$0xff]
      %v1946 = vld [vmem:[#allocation2 + $0x80] sm:$0xff]
      %v1947 = vld [vmem:[#allocation2 + $0x88] sm:$0xff]
      %v1948 = vld [vmem:[#allocation2 + $0x90] sm:$0xff]
      %v1949 = vld [vmem:[#allocation2 + $0x98] sm:$0xff]
      %v1950 = vld [vmem:[#allocation2 + $0xa0] sm:$0xff]
      %v1951 = vld [vmem:[#allocation2 + $0xa8] sm:$0xff]
      %v1952 = vld [vmem:[#allocation2 + $0xb0] sm:$0xff]
      %v1953 = vld [vmem:[#allocation2 + $0xb8] sm:$0xff]
      %v1954 = vld [vmem:[#allocation2 + $0xc0] sm:$0xff]
      %v1955 = vld [vmem:[#allocation2 + $0xc8] sm:$0xff]
      %v1956 = vld [vmem:[#allocation2 + $0xd0] sm:$0xff]
      %v1957 = vld [vmem:[#allocation2 + $0xd8] sm:$0xff]
      %v1958 = vld [vmem:[#allocation2 + $0xe0] sm:$0xff]
      %v1959 = vld [vmem:[#allocation2 + $0xe8] sm:$0xff]
      %v1960 = vld [vmem:[#allocation2 + $0xf0] sm:$0xff]
      %v1961 = vld [vmem:[#allocation2 + $0xf8] sm:$0xff]
      %v1962 = vld [vmem:[#allocation2 + $0x100] sm:$0xff]
      %v1963 = vld [vmem:[#allocation2 + $0x108] sm:$0xff]
      %v1964 = vld [vmem:[#allocation2 + $0x110] sm:$0xff]
      %v1965 = vld [vmem:[#allocation2 + $0x118] sm:$0xff]
      %v1966 = vld [vmem:[#allocation2 + $0x120] sm:$0xff]
      %v1967 = vld [vmem:[#allocation2 + $0x128] sm:$0xff]
      %v1968 = vld [vmem:[#allocation2 + $0x130] sm:$0xff]
      %v1969 = vld [vmem:[#allocation2 + $0x138] sm:$0xff]
      %v1970 = vld [vmem:[#allocation2 + $0x140] sm:$0xff]
      %v1971 = vld [vmem:[#allocation2 + $0x148] sm:$0xff]
      %v1972 = vld [vmem:[#allocation2 + $0x150] sm:$0xff]
      %v1973 = vld [vmem:[#allocation2 + $0x158] sm:$0xff]
      %v1974 = vld [vmem:[#allocation2 + $0x160] sm:$0xff]
      %v1975 = vld [vmem:[#allocation2 + $0x168] sm:$0xff]
      %v1976 = vld [vmem:[#allocation2 + $0x170] sm:$0xff]
      %v1977 = vld [vmem:[#allocation2 + $0x178] sm:$0xff]
      %v1978 = vld [vmem:[#allocation2 + $0x180] sm:$0xff]
      %v1979 = vld [vmem:[#allocation2 + $0x188] sm:$0xff]
      %v1980 = vld [vmem:[#allocation2 + $0x190] sm:$0xff]
      %v1981 = vld [vmem:[#allocation2 + $0x198] sm:$0xff]
      %v1982 = vld [vmem:[#allocation2 + $0x1a0] sm:$0xff]
      %v1983 = vld [vmem:[#allocation2 + $0x1a8] sm:$0xff]
      %v1984 = vld [vmem:[#allocation2 + $0x1b0] sm:$0xff]
      %v1985 = vld [vmem:[#allocation2 + $0x1b8] sm:$0xff]
      %v1986 = vld [vmem:[#allocation2 + $0x1c0] sm:$0xff]
      %v1987 = vld [vmem:[#allocation2 + $0x1c8] sm:$0xff]
      %v1988 = vld [vmem:[#allocation2 + $0x1d0] sm:$0xff]
      %v1989 = vld [vmem:[#allocation2 + $0x1d8] sm:$0xff]
      %v1990 = vld [vmem:[#allocation2 + $0x1e0] sm:$0xff]
      %v1991 = vld [vmem:[#allocation2 + $0x1e8] sm:$0xff]
      %v1992 = vld [vmem:[#allocation2 + $0x1f0] sm:$0xff]
      %v1993 = vld [vmem:[#allocation2 + $0x1f8] sm:$0xff]
      %v1994 = vpack.c.bf16 %v1931, %v1930
      %v1995 = vpack.c.bf16 %v1933, %v1932
      %v1996 = vpack.c.bf16 %v1935, %v1934
      %v1997 = vpack.c.bf16 %v1937, %v1936
      %v1998 = vpack.c.bf16 %v1939, %v1938
      %v1999 = vpack.c.bf16 %v1941, %v1940
      %v2000 = vpack.c.bf16 %v1943, %v1942
      %v2001 = vpack.c.bf16 %v1945, %v1944
      %v2002 = vpack.c.bf16 %v1947, %v1946
      %v2003 = vpack.c.bf16 %v1949, %v1948
      %v2004 = vpack.c.bf16 %v1951, %v1950
      %v2005 = vpack.c.bf16 %v1953, %v1952
      %v2006 = vpack.c.bf16 %v1955, %v1954
      %v2007 = vpack.c.bf16 %v1957, %v1956
      %v2008 = vpack.c.bf16 %v1959, %v1958
      %v2009 = vpack.c.bf16 %v1961, %v1960
      %v2010 = vpack.c.bf16 %v1963, %v1962
      %v2011 = vpack.c.bf16 %v1965, %v1964
      %v2012 = vpack.c.bf16 %v1967, %v1966
      %v2013 = vpack.c.bf16 %v1969, %v1968
      %v2014 = vpack.c.bf16 %v1971, %v1970
      %v2015 = vpack.c.bf16 %v1973, %v1972
      %v2016 = vpack.c.bf16 %v1975, %v1974
      %v2017 = vpack.c.bf16 %v1977, %v1976
      %v2018 = vpack.c.bf16 %v1979, %v1978
      %v2019 = vpack.c.bf16 %v1981, %v1980
      %v2020 = vpack.c.bf16 %v1983, %v1982
      %v2021 = vpack.c.bf16 %v1985, %v1984
      %v2022 = vpack.c.bf16 %v1987, %v1986
      %v2023 = vpack.c.bf16 %v1989, %v1988
      %v2024 = vpack.c.bf16 %v1991, %v1990
      %v2025 = vpack.c.bf16 %v1993, %v1992
      %v2026 = vld [vmem:[#allocation8] sm:$0xf]
      %v2027 = vld [vmem:[#allocation8 + $0x4] sm:$0xf]
      %v2028 = vld [vmem:[#allocation8 + $0x8] sm:$0xf]
      %v2029 = vld [vmem:[#allocation8 + $0xc] sm:$0xf]
      %v2030 = vld [vmem:[#allocation8 + $0x10] sm:$0xf]
      %v2031 = vld [vmem:[#allocation8 + $0x14] sm:$0xf]
      %v2032 = vld [vmem:[#allocation8 + $0x18] sm:$0xf]
      %v2033 = vld [vmem:[#allocation8 + $0x1c] sm:$0xf]
      %v2034 = vld [vmem:[#allocation8 + $0x20] sm:$0xf]
      %v2035 = vld [vmem:[#allocation8 + $0x24] sm:$0xf]
      %v2036 = vld [vmem:[#allocation8 + $0x28] sm:$0xf]
      %v2037 = vld [vmem:[#allocation8 + $0x2c] sm:$0xf]
      %v2038 = vld [vmem:[#allocation8 + $0x30] sm:$0xf]
      %v2039 = vld [vmem:[#allocation8 + $0x34] sm:$0xf]
      %v2040 = vld [vmem:[#allocation8 + $0x38] sm:$0xf]
      %v2041 = vld [vmem:[#allocation8 + $0x3c] sm:$0xf]
      %v2042 = vld [vmem:[%s3] sm:$0x1]
      %v2044 = vlaneseq
      %v2045 = vshrl.u32 %v2044, 7
      %v2046 = vsub.s32 0, %v2045
      %v2047 = vrot.slane %v2042, %v2046
      %v2065 = vunpack.c.l.b16 %v2026
      %v2066 = vunpack.c.l.b16 %v2027
      %v2067 = vunpack.c.l.b16 %v2028
      %v2068 = vunpack.c.l.b16 %v2029
      %v2069 = vunpack.c.l.b16 %v2030
      %v2070 = vunpack.c.l.b16 %v2031
      %v2071 = vunpack.c.l.b16 %v2032
      %v2072 = vunpack.c.l.b16 %v2033
      %v2073 = vunpack.c.l.b16 %v2034
      %v2074 = vunpack.c.l.b16 %v2035
      %v2075 = vunpack.c.l.b16 %v2036
      %v2076 = vunpack.c.l.b16 %v2037
      %v2077 = vunpack.c.l.b16 %v2038
      %v2078 = vunpack.c.l.b16 %v2039
      %v2079 = vunpack.c.l.b16 %v2040
      %v2080 = vunpack.c.l.b16 %v2041
      %v2081 = vpack.c.b16 %v2066, %v2065
      %v2082 = vpack.c.b16 %v2068, %v2067
      %v2083 = vpack.c.b16 %v2070, %v2069
      %v2084 = vpack.c.b16 %v2072, %v2071
      %v2085 = vpack.c.b16 %v2074, %v2073
      %v2086 = vpack.c.b16 %v2076, %v2075
      %v2087 = vpack.c.b16 %v2078, %v2077
      %v2088 = vpack.c.b16 %v2080, %v2079
      %2097 = vmatprep.subr.bf16.mxu0 0
      %2098 = vmatpush1.bf16.msra.mxu0 %v2081
      %2099 = vmatprep.subr.bf16.mxu0 0
      %2100 = vmatpush1.bf16.msra.mxu0 %v2082
      %2101 = vmatprep.subr.bf16.mxu0 0
      %2102 = vmatpush1.bf16.msra.mxu0 %v2083
      %2103 = vmatprep.subr.bf16.mxu0 0
      %2104 = vmatpush1.bf16.msra.mxu0 %v2084
      %2105 = vmatprep.subr.bf16.mxu0 0
      %2106 = vmatpush1.bf16.msra.mxu0 %v2085
      %2107 = vmatprep.subr.bf16.mxu0 0
      %2108 = vmatpush1.bf16.msra.mxu0 %v2086
      %2109 = vmatprep.subr.bf16.mxu0 0
      %2110 = vmatpush1.bf16.msra.mxu0 %v2087
      %2111 = vmatprep.subr.bf16.mxu0 0
      %2112 = vmatpush1.bf16.msra.mxu0 %v2088
      %2113 = vmatprep.subr.bf16.mxu0 0
      %2114 = vmatpush1.bf16.msra.mxu0 0
      %2115 = vmatprep.subr.bf16.mxu0 0
      %2116 = vmatpush1.bf16.msra.mxu0 0
      %2117 = vmatprep.subr.bf16.mxu0 0
      %2118 = vmatpush1.bf16.msra.mxu0 0
      %2119 = vmatprep.subr.bf16.mxu0 0
      %2120 = vmatpush1.bf16.msra.mxu0 0
      %2121 = vmatprep.subr.bf16.mxu0 0
      %2122 = vmatpush1.bf16.msra.mxu0 0
      %2123 = vmatprep.subr.bf16.mxu0 0
      %2124 = vmatpush1.bf16.msra.mxu0 0
      %2125 = vmatprep.subr.bf16.mxu0 0
      %2126 = vmatpush1.bf16.msra.mxu0 0
      %2127 = vmatprep.subr.bf16.mxu0 0
      %2128 = vmatpush1.bf16.msra.mxu0 0
      %2129 = vmatprep.mubr.bf16.mxu0 0
      %2130 = vmatmul.mubr.bf16.gmra.mrb[0].mxu0 %v1994
      %v2131 = vpop.f32.mrb[0].mxu0
      %v2132 = vadd.f32 %v2047, %v2131
      %v2133 = vpop.f32.mrb[0].mxu0
      %v2134 = vpop.f32.mrb[0].mxu0
      %v2135 = vadd.f32 %v2047, %v2134
      %v2136 = vpop.f32.mrb[0].mxu0
      %2137 = vmatprep.mubr.bf16.mxu0 0
      %2138 = vmatmul.mubr.bf16.gmra.mrb[0].mxu0 %v1995
      %v2139 = vpop.f32.mrb[0].mxu0
      %v2140 = vadd.f32 %v2047, %v2139
      %v2141 = vpop.f32.mrb[0].mxu0
      %v2142 = vpop.f32.mrb[0].mxu0
      %v2143 = vadd.f32 %v2047, %v2142
      %v2144 = vpop.f32.mrb[0].mxu0
      %2145 = vmatprep.mubr.bf16.mxu0 0
      %2146 = vmatmul.mubr.bf16.gmra.mrb[0].mxu0 %v1996
      %v2147 = vpop.f32.mrb[0].mxu0
      %v2148 = vadd.f32 %v2047, %v2147
      %v2149 = vpop.f32.mrb[0].mxu0
      %v2150 = vpop.f32.mrb[0].mxu0
      %v2151 = vadd.f32 %v2047, %v2150
      %v2152 = vpop.f32.mrb[0].mxu0
      %2153 = vmatprep.mubr.bf16.mxu0 0
      %2154 = vmatmul.mubr.bf16.gmra.mrb[0].mxu0 %v1997
      %v2155 = vpop.f32.mrb[0].mxu0
      %v2156 = vadd.f32 %v2047, %v2155
      %v2157 = vpop.f32.mrb[0].mxu0
      %v2158 = vpop.f32.mrb[0].mxu0
      %v2159 = vadd.f32 %v2047, %v2158
      %v2160 = vpop.f32.mrb[0].mxu0
      %2161 = vmatprep.mubr.bf16.mxu0 0
      %2162 = vmatmul.mubr.bf16.gmra.mrb[0].mxu0 %v1998
      %v2163 = vpop.f32.mrb[0].mxu0
      %v2164 = vadd.f32 %v2047, %v2163
      %v2165 = vpop.f32.mrb[0].mxu0
      %v2166 = vpop.f32.mrb[0].mxu0
      %v2167 = vadd.f32 %v2047, %v2166
      %v2168 = vpop.f32.mrb[0].mxu0
      %2169 = vmatprep.mubr.bf16.mxu0 0
      %2170 = vmatmul.mubr.bf16.gmra.mrb[0].mxu0 %v1999
      %v2171 = vpop.f32.mrb[0].mxu0
      %v2172 = vadd.f32 %v2047, %v2171
      %v2173 = vpop.f32.mrb[0].mxu0
      %v2174 = vpop.f32.mrb[0].mxu0
      %v2175 = vadd.f32 %v2047, %v2174
      %v2176 = vpop.f32.mrb[0].mxu0
      %2177 = vmatprep.mubr.bf16.mxu0 0
      %2178 = vmatmul.mubr.bf16.gmra.mrb[0].mxu0 %v2000
      %v2179 = vpop.f32.mrb[0].mxu0
      %v2180 = vadd.f32 %v2047, %v2179
      %v2181 = vpop.f32.mrb[0].mxu0
      %v2182 = vpop.f32.mrb[0].mxu0
      %v2183 = vadd.f32 %v2047, %v2182
      %v2184 = vpop.f32.mrb[0].mxu0
      %2185 = vmatprep.mubr.bf16.mxu0 0
      %2186 = vmatmul.mubr.bf16.gmra.mrb[0].mxu0 %v2001
      %v2187 = vpop.f32.mrb[0].mxu0
      %v2188 = vadd.f32 %v2047, %v2187
      %v2189 = vpop.f32.mrb[0].mxu0
      %v2190 = vpop.f32.mrb[0].mxu0
      %v2191 = vadd.f32 %v2047, %v2190
      %v2192 = vpop.f32.mrb[0].mxu0
      %2193 = vmatprep.mubr.bf16.mxu0 0
      %2194 = vmatmul.mubr.bf16.gmra.mrb[0].mxu0 %v2002
      %v2195 = vpop.f32.mrb[0].mxu0
      %v2196 = vadd.f32 %v2047, %v2195
      %v2197 = vpop.f32.mrb[0].mxu0
      %v2198 = vpop.f32.mrb[0].mxu0
      %v2199 = vadd.f32 %v2047, %v2198
      %v2200 = vpop.f32.mrb[0].mxu0
      %2201 = vmatprep.mubr.bf16.mxu0 0
      %2202 = vmatmul.mubr.bf16.gmra.mrb[0].mxu0 %v2003
      %v2203 = vpop.f32.mrb[0].mxu0
      %v2204 = vadd.f32 %v2047, %v2203
      %v2205 = vpop.f32.mrb[0].mxu0
      %v2206 = vpop.f32.mrb[0].mxu0
      %v2207 = vadd.f32 %v2047, %v2206
      %v2208 = vpop.f32.mrb[0].mxu0
      %2209 = vmatprep.mubr.bf16.mxu0 0
      %2210 = vmatmul.mubr.bf16.gmra.mrb[0].mxu0 %v2004
      %v2211 = vpop.f32.mrb[0].mxu0
      %v2212 = vadd.f32 %v2047, %v2211
      %v2213 = vpop.f32.mrb[0].mxu0
      %v2214 = vpop.f32.mrb[0].mxu0
      %v2215 = vadd.f32 %v2047, %v2214
      %v2216 = vpop.f32.mrb[0].mxu0
      %2217 = vmatprep.mubr.bf16.mxu0 0
      %2218 = vmatmul.mubr.bf16.gmra.mrb[0].mxu0 %v2005
      %v2219 = vpop.f32.mrb[0].mxu0
      %v2220 = vadd.f32 %v2047, %v2219
      %v2221 = vpop.f32.mrb[0].mxu0
      %v2222 = vpop.f32.mrb[0].mxu0
      %v2223 = vadd.f32 %v2047, %v2222
      %v2224 = vpop.f32.mrb[0].mxu0
      %2225 = vmatprep.mubr.bf16.mxu0 0
      %2226 = vmatmul.mubr.bf16.gmra.mrb[0].mxu0 %v2006
      %v2227 = vpop.f32.mrb[0].mxu0
      %v2228 = vadd.f32 %v2047, %v2227
      %v2229 = vpop.f32.mrb[0].mxu0
      %v2230 = vpop.f32.mrb[0].mxu0
      %v2231 = vadd.f32 %v2047, %v2230
      %v2232 = vpop.f32.mrb[0].mxu0
      %2233 = vmatprep.mubr.bf16.mxu0 0
      %2234 = vmatmul.mubr.bf16.gmra.mrb[0].mxu0 %v2007
      %v2235 = vpop.f32.mrb[0].mxu0
      %v2236 = vadd.f32 %v2047, %v2235
      %v2237 = vpop.f32.mrb[0].mxu0
      %v2238 = vpop.f32.mrb[0].mxu0
      %v2239 = vadd.f32 %v2047, %v2238
      %v2240 = vpop.f32.mrb[0].mxu0
      %2241 = vmatprep.mubr.bf16.mxu0 0
      %2242 = vmatmul.mubr.bf16.gmra.mrb[0].mxu0 %v2008
      %v2243 = vpop.f32.mrb[0].mxu0
      %v2244 = vadd.f32 %v2047, %v2243
      %v2245 = vpop.f32.mrb[0].mxu0
      %v2246 = vpop.f32.mrb[0].mxu0
      %v2247 = vadd.f32 %v2047, %v2246
      %v2248 = vpop.f32.mrb[0].mxu0
      %2249 = vmatprep.mubr.bf16.mxu0 0
      %2250 = vmatmul.mubr.bf16.gmra.mrb[0].mxu0 %v2009
      %v2251 = vpop.f32.mrb[0].mxu0
      %v2252 = vadd.f32 %v2047, %v2251
      %v2253 = vpop.f32.mrb[0].mxu0
      %v2254 = vpop.f32.mrb[0].mxu0
      %v2255 = vadd.f32 %v2047, %v2254
      %v2256 = vpop.f32.mrb[0].mxu0
      %2257 = vmatprep.mubr.bf16.mxu0 0
      %2258 = vmatmul.mubr.bf16.gmra.mrb[0].mxu0 %v2010
      %v2259 = vpop.f32.mrb[0].mxu0
      %v2260 = vadd.f32 %v2047, %v2259
      %v2261 = vpop.f32.mrb[0].mxu0
      %v2262 = vpop.f32.mrb[0].mxu0
      %v2263 = vadd.f32 %v2047, %v2262
      %v2264 = vpop.f32.mrb[0].mxu0
      %2265 = vmatprep.mubr.bf16.mxu0 0
      %2266 = vmatmul.mubr.bf16.gmra.mrb[0].mxu0 %v2011
      %v2267 = vpop.f32.mrb[0].mxu0
      %v2268 = vadd.f32 %v2047, %v2267
      %v2269 = vpop.f32.mrb[0].mxu0
      %v2270 = vpop.f32.mrb[0].mxu0
      %v2271 = vadd.f32 %v2047, %v2270
      %v2272 = vpop.f32.mrb[0].mxu0
      %2273 = vmatprep.mubr.bf16.mxu0 0
      %2274 = vmatmul.mubr.bf16.gmra.mrb[0].mxu0 %v2012
      %v2275 = vpop.f32.mrb[0].mxu0
      %v2276 = vadd.f32 %v2047, %v2275
      %v2277 = vpop.f32.mrb[0].mxu0
      %v2278 = vpop.f32.mrb[0].mxu0
      %v2279 = vadd.f32 %v2047, %v2278
      %v2280 = vpop.f32.mrb[0].mxu0
      %2281 = vmatprep.mubr.bf16.mxu0 0
      %2282 = vmatmul.mubr.bf16.gmra.mrb[0].mxu0 %v2013
      %v2283 = vpop.f32.mrb[0].mxu0
      %v2284 = vadd.f32 %v2047, %v2283
      %v2285 = vpop.f32.mrb[0].mxu0
      %v2286 = vpop.f32.mrb[0].mxu0
      %v2287 = vadd.f32 %v2047, %v2286
      %v2288 = vpop.f32.mrb[0].mxu0
      %2289 = vmatprep.mubr.bf16.mxu0 0
      %2290 = vmatmul.mubr.bf16.gmra.mrb[0].mxu0 %v2014
      %v2291 = vpop.f32.mrb[0].mxu0
      %v2292 = vadd.f32 %v2047, %v2291
      %v2293 = vpop.f32.mrb[0].mxu0
      %v2294 = vpop.f32.mrb[0].mxu0
      %v2295 = vadd.f32 %v2047, %v2294
      %v2296 = vpop.f32.mrb[0].mxu0
      %2297 = vmatprep.mubr.bf16.mxu0 0
      %2298 = vmatmul.mubr.bf16.gmra.mrb[0].mxu0 %v2015
      %v2299 = vpop.f32.mrb[0].mxu0
      %v2300 = vadd.f32 %v2047, %v2299
      %v2301 = vpop.f32.mrb[0].mxu0
      %v2302 = vpop.f32.mrb[0].mxu0
      %v2303 = vadd.f32 %v2047, %v2302
      %v2304 = vpop.f32.mrb[0].mxu0
      %2305 = vmatprep.mubr.bf16.mxu0 0
      %2306 = vmatmul.mubr.bf16.gmra.mrb[0].mxu0 %v2016
      %v2307 = vpop.f32.mrb[0].mxu0
      %v2308 = vadd.f32 %v2047, %v2307
      %v2309 = vpop.f32.mrb[0].mxu0
      %v2310 = vpop.f32.mrb[0].mxu0
      %v2311 = vadd.f32 %v2047, %v2310
      %v2312 = vpop.f32.mrb[0].mxu0
      %2313 = vmatprep.mubr.bf16.mxu0 0
      %2314 = vmatmul.mubr.bf16.gmra.mrb[0].mxu0 %v2017
      %v2315 = vpop.f32.mrb[0].mxu0
      %v2316 = vadd.f32 %v2047, %v2315
      %v2317 = vpop.f32.mrb[0].mxu0
      %v2318 = vpop.f32.mrb[0].mxu0
      %v2319 = vadd.f32 %v2047, %v2318
      %v2320 = vpop.f32.mrb[0].mxu0
      %2321 = vmatprep.mubr.bf16.mxu0 0
      %2322 = vmatmul.mubr.bf16.gmra.mrb[0].mxu0 %v2018
      %v2323 = vpop.f32.mrb[0].mxu0
      %v2324 = vadd.f32 %v2047, %v2323
      %v2325 = vpop.f32.mrb[0].mxu0
      %v2326 = vpop.f32.mrb[0].mxu0
      %v2327 = vadd.f32 %v2047, %v2326
      %v2328 = vpop.f32.mrb[0].mxu0
      %2329 = vmatprep.mubr.bf16.mxu0 0
      %2330 = vmatmul.mubr.bf16.gmra.mrb[0].mxu0 %v2019
      %v2331 = vpop.f32.mrb[0].mxu0
      %v2332 = vadd.f32 %v2047, %v2331
      %v2333 = vpop.f32.mrb[0].mxu0
      %v2334 = vpop.f32.mrb[0].mxu0
      %v2335 = vadd.f32 %v2047, %v2334
      %v2336 = vpop.f32.mrb[0].mxu0
      %2337 = vmatprep.mubr.bf16.mxu0 0
      %2338 = vmatmul.mubr.bf16.gmra.mrb[0].mxu0 %v2020
      %v2339 = vpop.f32.mrb[0].mxu0
      %v2340 = vadd.f32 %v2047, %v2339
      %v2341 = vpop.f32.mrb[0].mxu0
      %v2342 = vpop.f32.mrb[0].mxu0
      %v2343 = vadd.f32 %v2047, %v2342
      %v2344 = vpop.f32.mrb[0].mxu0
      %2345 = vmatprep.mubr.bf16.mxu0 0
      %2346 = vmatmul.mubr.bf16.gmra.mrb[0].mxu0 %v2021
      %v2347 = vpop.f32.mrb[0].mxu0
      %v2348 = vadd.f32 %v2047, %v2347
      %v2349 = vpop.f32.mrb[0].mxu0
      %v2350 = vpop.f32.mrb[0].mxu0
      %v2351 = vadd.f32 %v2047, %v2350
      %v2352 = vpop.f32.mrb[0].mxu0
      %2353 = vmatprep.mubr.bf16.mxu0 0
      %2354 = vmatmul.mubr.bf16.gmra.mrb[0].mxu0 %v2022
      %v2355 = vpop.f32.mrb[0].mxu0
      %v2356 = vadd.f32 %v2047, %v2355
      %v2357 = vpop.f32.mrb[0].mxu0
      %v2358 = vpop.f32.mrb[0].mxu0
      %v2359 = vadd.f32 %v2047, %v2358
      %v2360 = vpop.f32.mrb[0].mxu0
      %2361 = vmatprep.mubr.bf16.mxu0 0
      %2362 = vmatmul.mubr.bf16.gmra.mrb[0].mxu0 %v2023
      %v2363 = vpop.f32.mrb[0].mxu0
      %v2364 = vadd.f32 %v2047, %v2363
      %v2365 = vpop.f32.mrb[0].mxu0
      %v2366 = vpop.f32.mrb[0].mxu0
      %v2367 = vadd.f32 %v2047, %v2366
      %v2368 = vpop.f32.mrb[0].mxu0
      %2369 = vmatprep.mubr.bf16.mxu0 0
      %2370 = vmatmul.mubr.bf16.gmra.mrb[0].mxu0 %v2024
      %v2371 = vpop.f32.mrb[0].mxu0
      %v2372 = vadd.f32 %v2047, %v2371
      %v2373 = vpop.f32.mrb[0].mxu0
      %v2374 = vpop.f32.mrb[0].mxu0
      %v2375 = vadd.f32 %v2047, %v2374
      %v2376 = vpop.f32.mrb[0].mxu0
      %2377 = vmatprep.mubr.bf16.mxu0 0
      %2378 = vmatmul.mubr.bf16.gmra.mrb[0].mxu0 %v2025
      %v2379 = vpop.f32.mrb[0].mxu0
      %v2380 = vadd.f32 %v2047, %v2379
      %v2381 = vpop.f32.mrb[0].mxu0
      %v2382 = vpop.f32.mrb[0].mxu0
      %v2383 = vadd.f32 %v2047, %v2382
      %v2384 = vpop.f32.mrb[0].mxu0
      %2385 = vdwg.mxu0
      %v2386 = vmax.f32 %v2132, 0.0
      %v2387 = vmax.f32 %v2135, 0.0
      %v2388 = vmax.f32 %v2140, 0.0
      %v2389 = vmax.f32 %v2143, 0.0
      %v2390 = vmax.f32 %v2148, 0.0
      %v2391 = vmax.f32 %v2151, 0.0
      %v2392 = vmax.f32 %v2156, 0.0
      %v2393 = vmax.f32 %v2159, 0.0
      %v2394 = vmax.f32 %v2164, 0.0
      %v2395 = vmax.f32 %v2167, 0.0
      %v2396 = vmax.f32 %v2172, 0.0
      %v2397 = vmax.f32 %v2175, 0.0
      %v2398 = vmax.f32 %v2180, 0.0
      %v2399 = vmax.f32 %v2183, 0.0
      %v2400 = vmax.f32 %v2188, 0.0
      %v2401 = vmax.f32 %v2191, 0.0
      %v2402 = vmax.f32 %v2196, 0.0
      %v2403 = vmax.f32 %v2199, 0.0
      %v2404 = vmax.f32 %v2204, 0.0
      %v2405 = vmax.f32 %v2207, 0.0
      %v2406 = vmax.f32 %v2212, 0.0
      %v2407 = vmax.f32 %v2215, 0.0
      %v2408 = vmax.f32 %v2220, 0.0
      %v2409 = vmax.f32 %v2223, 0.0
      %v2410 = vmax.f32 %v2228, 0.0
      %v2411 = vmax.f32 %v2231, 0.0
      %v2412 = vmax.f32 %v2236, 0.0
      %v2413 = vmax.f32 %v2239, 0.0
      %v2414 = vmax.f32 %v2244, 0.0
      %v2415 = vmax.f32 %v2247, 0.0
      %v2416 = vmax.f32 %v2252, 0.0
      %v2417 = vmax.f32 %v2255, 0.0
      %v2418 = vmax.f32 %v2260, 0.0
      %v2419 = vmax.f32 %v2263, 0.0
      %v2420 = vmax.f32 %v2268, 0.0
      %v2421 = vmax.f32 %v2271, 0.0
      %v2422 = vmax.f32 %v2276, 0.0
      %v2423 = vmax.f32 %v2279, 0.0
      %v2424 = vmax.f32 %v2284, 0.0
      %v2425 = vmax.f32 %v2287, 0.0
      %v2426 = vmax.f32 %v2292, 0.0
      %v2427 = vmax.f32 %v2295, 0.0
      %v2428 = vmax.f32 %v2300, 0.0
      %v2429 = vmax.f32 %v2303, 0.0
      %v2430 = vmax.f32 %v2308, 0.0
      %v2431 = vmax.f32 %v2311, 0.0
      %v2432 = vmax.f32 %v2316, 0.0
      %v2433 = vmax.f32 %v2319, 0.0
      %v2434 = vmax.f32 %v2324, 0.0
      %v2435 = vmax.f32 %v2327, 0.0
      %v2436 = vmax.f32 %v2332, 0.0
      %v2437 = vmax.f32 %v2335, 0.0
      %v2438 = vmax.f32 %v2340, 0.0
      %v2439 = vmax.f32 %v2343, 0.0
      %v2440 = vmax.f32 %v2348, 0.0
      %v2441 = vmax.f32 %v2351, 0.0
      %v2442 = vmax.f32 %v2356, 0.0
      %v2443 = vmax.f32 %v2359, 0.0
      %v2444 = vmax.f32 %v2364, 0.0
      %v2445 = vmax.f32 %v2367, 0.0
      %v2446 = vmax.f32 %v2372, 0.0
      %v2447 = vmax.f32 %v2375, 0.0
      %v2448 = vmax.f32 %v2380, 0.0
      %v2449 = vmax.f32 %v2383, 0.0
      %v2450 = vpack.c.bf16 %v2387, %v2386
      %v2451 = vpack.c.bf16 %v2389, %v2388
      %v2452 = vpack.c.bf16 %v2391, %v2390
      %v2453 = vpack.c.bf16 %v2393, %v2392
      %v2454 = vpack.c.bf16 %v2395, %v2394
      %v2455 = vpack.c.bf16 %v2397, %v2396
      %v2456 = vpack.c.bf16 %v2399, %v2398
      %v2457 = vpack.c.bf16 %v2401, %v2400
      %v2458 = vpack.c.bf16 %v2403, %v2402
      %v2459 = vpack.c.bf16 %v2405, %v2404
      %v2460 = vpack.c.bf16 %v2407, %v2406
      %v2461 = vpack.c.bf16 %v2409, %v2408
      %v2462 = vpack.c.bf16 %v2411, %v2410
      %v2463 = vpack.c.bf16 %v2413, %v2412
      %v2464 = vpack.c.bf16 %v2415, %v2414
      %v2465 = vpack.c.bf16 %v2417, %v2416
      %v2466 = vpack.c.bf16 %v2419, %v2418
      %v2467 = vpack.c.bf16 %v2421, %v2420
      %v2468 = vpack.c.bf16 %v2423, %v2422
      %v2469 = vpack.c.bf16 %v2425, %v2424
      %v2470 = vpack.c.bf16 %v2427, %v2426
      %v2471 = vpack.c.bf16 %v2429, %v2428
      %v2472 = vpack.c.bf16 %v2431, %v2430
      %v2473 = vpack.c.bf16 %v2433, %v2432
      %v2474 = vpack.c.bf16 %v2435, %v2434
      %v2475 = vpack.c.bf16 %v2437, %v2436
      %v2476 = vpack.c.bf16 %v2439, %v2438
      %v2477 = vpack.c.bf16 %v2441, %v2440
      %v2478 = vpack.c.bf16 %v2443, %v2442
      %v2479 = vpack.c.bf16 %v2445, %v2444
      %v2480 = vpack.c.bf16 %v2447, %v2446
      %v2481 = vpack.c.bf16 %v2449, %v2448
      %v2514 = vunpack.c.l.b16 %v2450
      %v2515 = vunpack.c.h.b16 %v2450
      %v2516 = vunpack.c.l.b16 %v2451
      %v2517 = vunpack.c.h.b16 %v2451
      %v2518 = vunpack.c.l.b16 %v2452
      %v2519 = vunpack.c.h.b16 %v2452
      %v2520 = vunpack.c.l.b16 %v2453
      %v2521 = vunpack.c.h.b16 %v2453
      %v2522 = vunpack.c.l.b16 %v2454
      %v2523 = vunpack.c.h.b16 %v2454
      %v2524 = vunpack.c.l.b16 %v2455
      %v2525 = vunpack.c.h.b16 %v2455
      %v2526 = vunpack.c.l.b16 %v2456
      %v2527 = vunpack.c.h.b16 %v2456
      %v2528 = vunpack.c.l.b16 %v2457
      %v2529 = vunpack.c.h.b16 %v2457
      %v2530 = vunpack.c.l.b16 %v2458
      %v2531 = vunpack.c.h.b16 %v2458
      %v2532 = vunpack.c.l.b16 %v2459
      %v2533 = vunpack.c.h.b16 %v2459
      %v2534 = vunpack.c.l.b16 %v2460
      %v2535 = vunpack.c.h.b16 %v2460
      %v2536 = vunpack.c.l.b16 %v2461
      %v2537 = vunpack.c.h.b16 %v2461
      %v2538 = vunpack.c.l.b16 %v2462
      %v2539 = vunpack.c.h.b16 %v2462
      %v2540 = vunpack.c.l.b16 %v2463
      %v2541 = vunpack.c.h.b16 %v2463
      %v2542 = vunpack.c.l.b16 %v2464
      %v2543 = vunpack.c.h.b16 %v2464
      %v2544 = vunpack.c.l.b16 %v2465
      %v2545 = vunpack.c.h.b16 %v2465
      %v2546 = vunpack.c.l.b16 %v2466
      %v2547 = vunpack.c.h.b16 %v2466
      %v2548 = vunpack.c.l.b16 %v2467
      %v2549 = vunpack.c.h.b16 %v2467
      %v2550 = vunpack.c.l.b16 %v2468
      %v2551 = vunpack.c.h.b16 %v2468
      %v2552 = vunpack.c.l.b16 %v2469
      %v2553 = vunpack.c.h.b16 %v2469
      %v2554 = vunpack.c.l.b16 %v2470
      %v2555 = vunpack.c.h.b16 %v2470
      %v2556 = vunpack.c.l.b16 %v2471
      %v2557 = vunpack.c.h.b16 %v2471
      %v2558 = vunpack.c.l.b16 %v2472
      %v2559 = vunpack.c.h.b16 %v2472
      %v2560 = vunpack.c.l.b16 %v2473
      %v2561 = vunpack.c.h.b16 %v2473
      %v2562 = vunpack.c.l.b16 %v2474
      %v2563 = vunpack.c.h.b16 %v2474
      %v2564 = vunpack.c.l.b16 %v2475
      %v2565 = vunpack.c.h.b16 %v2475
      %v2566 = vunpack.c.l.b16 %v2476
      %v2567 = vunpack.c.h.b16 %v2476
      %v2568 = vunpack.c.l.b16 %v2477
      %v2569 = vunpack.c.h.b16 %v2477
      %v2570 = vunpack.c.l.b16 %v2478
      %v2571 = vunpack.c.h.b16 %v2478
      %v2572 = vunpack.c.l.b16 %v2479
      %v2573 = vunpack.c.h.b16 %v2479
      %v2574 = vunpack.c.l.b16 %v2480
      %v2575 = vunpack.c.h.b16 %v2480
      %v2576 = vunpack.c.l.b16 %v2481
      %v2577 = vunpack.c.h.b16 %v2481
      %v2578 = vpack.c.b16 %v2514, %v2514
      %v2579 = vpack.c.b16 %v2515, %v2515
      %v2580 = vpack.c.b16 %v2516, %v2516
      %v2581 = vpack.c.b16 %v2517, %v2517
      %v2582 = vpack.c.b16 %v2518, %v2518
      %v2583 = vpack.c.b16 %v2519, %v2519
      %v2584 = vpack.c.b16 %v2520, %v2520
      %v2585 = vpack.c.b16 %v2521, %v2521
      %v2586 = vpack.c.b16 %v2522, %v2522
      %v2587 = vpack.c.b16 %v2523, %v2523
      %v2588 = vpack.c.b16 %v2524, %v2524
      %v2589 = vpack.c.b16 %v2525, %v2525
      %v2590 = vpack.c.b16 %v2526, %v2526
      %v2591 = vpack.c.b16 %v2527, %v2527
      %v2592 = vpack.c.b16 %v2528, %v2528
      %v2593 = vpack.c.b16 %v2529, %v2529
      %v2594 = vpack.c.b16 %v2530, %v2530
      %v2595 = vpack.c.b16 %v2531, %v2531
      %v2596 = vpack.c.b16 %v2532, %v2532
      %v2597 = vpack.c.b16 %v2533, %v2533
      %v2598 = vpack.c.b16 %v2534, %v2534
      %v2599 = vpack.c.b16 %v2535, %v2535
      %v2600 = vpack.c.b16 %v2536, %v2536
      %v2601 = vpack.c.b16 %v2537, %v2537
      %v2602 = vpack.c.b16 %v2538, %v2538
      %v2603 = vpack.c.b16 %v2539, %v2539
      %v2604 = vpack.c.b16 %v2540, %v2540
      %v2605 = vpack.c.b16 %v2541, %v2541
      %v2606 = vpack.c.b16 %v2542, %v2542
      %v2607 = vpack.c.b16 %v2543, %v2543
      %v2608 = vpack.c.b16 %v2544, %v2544
      %v2609 = vpack.c.b16 %v2545, %v2545
      %v2610 = vpack.c.b16 %v2546, %v2546
      %v2611 = vpack.c.b16 %v2547, %v2547
      %v2612 = vpack.c.b16 %v2548, %v2548
      %v2613 = vpack.c.b16 %v2549, %v2549
      %v2614 = vpack.c.b16 %v2550, %v2550
      %v2615 = vpack.c.b16 %v2551, %v2551
      %v2616 = vpack.c.b16 %v2552, %v2552
      %v2617 = vpack.c.b16 %v2553, %v2553
      %v2618 = vpack.c.b16 %v2554, %v2554
      %v2619 = vpack.c.b16 %v2555, %v2555
      %v2620 = vpack.c.b16 %v2556, %v2556
      %v2621 = vpack.c.b16 %v2557, %v2557
      %v2622 = vpack.c.b16 %v2558, %v2558
      %v2623 = vpack.c.b16 %v2559, %v2559
      %v2624 = vpack.c.b16 %v2560, %v2560
      %v2625 = vpack.c.b16 %v2561, %v2561
      %v2626 = vpack.c.b16 %v2562, %v2562
      %v2627 = vpack.c.b16 %v2563, %v2563
      %v2628 = vpack.c.b16 %v2564, %v2564
      %v2629 = vpack.c.b16 %v2565, %v2565
      %v2630 = vpack.c.b16 %v2566, %v2566
      %v2631 = vpack.c.b16 %v2567, %v2567
      %v2632 = vpack.c.b16 %v2568, %v2568
      %v2633 = vpack.c.b16 %v2569, %v2569
      %v2634 = vpack.c.b16 %v2570, %v2570
      %v2635 = vpack.c.b16 %v2571, %v2571
      %v2636 = vpack.c.b16 %v2572, %v2572
      %v2637 = vpack.c.b16 %v2573, %v2573
      %v2638 = vpack.c.b16 %v2574, %v2574
      %v2639 = vpack.c.b16 %v2575, %v2575
      %v2640 = vpack.c.b16 %v2576, %v2576
      %v2641 = vpack.c.b16 %v2577, %v2577
      %2706 = vst [vmem:[#allocation9] sm:$0xf] %v2578
      %2707 = vst [vmem:[#allocation9 + $0x4] sm:$0xf] %v2579
      %2708 = vst [vmem:[#allocation9 + $0x8] sm:$0xf] %v2580
      %2709 = vst [vmem:[#allocation9 + $0xc] sm:$0xf] %v2581
      %2710 = vst [vmem:[#allocation9 + $0x10] sm:$0xf] %v2582
      %2711 = vst [vmem:[#allocation9 + $0x14] sm:$0xf] %v2583
      %2712 = vst [vmem:[#allocation9 + $0x18] sm:$0xf] %v2584
      %2713 = vst [vmem:[#allocation9 + $0x1c] sm:$0xf] %v2585
      %2714 = vst [vmem:[#allocation9 + $0x20] sm:$0xf] %v2586
      %2715 = vst [vmem:[#allocation9 + $0x24] sm:$0xf] %v2587
      %2716 = vst [vmem:[#allocation9 + $0x28] sm:$0xf] %v2588
      %2717 = vst [vmem:[#allocation9 + $0x2c] sm:$0xf] %v2589
      %2718 = vst [vmem:[#allocation9 + $0x30] sm:$0xf] %v2590
      %2719 = vst [vmem:[#allocation9 + $0x34] sm:$0xf] %v2591
      %2720 = vst [vmem:[#allocation9 + $0x38] sm:$0xf] %v2592
      %2721 = vst [vmem:[#allocation9 + $0x3c] sm:$0xf] %v2593
      %2722 = vst [vmem:[#allocation9 + $0x40] sm:$0xf] %v2594
      %2723 = vst [vmem:[#allocation9 + $0x44] sm:$0xf] %v2595
      %2724 = vst [vmem:[#allocation9 + $0x48] sm:$0xf] %v2596
      %2725 = vst [vmem:[#allocation9 + $0x4c] sm:$0xf] %v2597
      %2726 = vst [vmem:[#allocation9 + $0x50] sm:$0xf] %v2598
      %2727 = vst [vmem:[#allocation9 + $0x54] sm:$0xf] %v2599
      %2728 = vst [vmem:[#allocation9 + $0x58] sm:$0xf] %v2600
      %2729 = vst [vmem:[#allocation9 + $0x5c] sm:$0xf] %v2601
      %2730 = vst [vmem:[#allocation9 + $0x60] sm:$0xf] %v2602
      %2731 = vst [vmem:[#allocation9 + $0x64] sm:$0xf] %v2603
      %2732 = vst [vmem:[#allocation9 + $0x68] sm:$0xf] %v2604
      %2733 = vst [vmem:[#allocation9 + $0x6c] sm:$0xf] %v2605
      %2734 = vst [vmem:[#allocation9 + $0x70] sm:$0xf] %v2606
      %2735 = vst [vmem:[#allocation9 + $0x74] sm:$0xf] %v2607
      %2736 = vst [vmem:[#allocation9 + $0x78] sm:$0xf] %v2608
      %2737 = vst [vmem:[#allocation9 + $0x7c] sm:$0xf] %v2609
      %2738 = vst [vmem:[#allocation9 + $0x80] sm:$0xf] %v2610
      %2739 = vst [vmem:[#allocation9 + $0x84] sm:$0xf] %v2611
      %2740 = vst [vmem:[#allocation9 + $0x88] sm:$0xf] %v2612
      %2741 = vst [vmem:[#allocation9 + $0x8c] sm:$0xf] %v2613
      %2742 = vst [vmem:[#allocation9 + $0x90] sm:$0xf] %v2614
      %2743 = vst [vmem:[#allocation9 + $0x94] sm:$0xf] %v2615
      %2744 = vst [vmem:[#allocation9 + $0x98] sm:$0xf] %v2616
      %2745 = vst [vmem:[#allocation9 + $0x9c] sm:$0xf] %v2617
      %2746 = vst [vmem:[#allocation9 + $0xa0] sm:$0xf] %v2618
      %2747 = vst [vmem:[#allocation9 + $0xa4] sm:$0xf] %v2619
      %2748 = vst [vmem:[#allocation9 + $0xa8] sm:$0xf] %v2620
      %2749 = vst [vmem:[#allocation9 + $0xac] sm:$0xf] %v2621
      %2750 = vst [vmem:[#allocation9 + $0xb0] sm:$0xf] %v2622
      %2751 = vst [vmem:[#allocation9 + $0xb4] sm:$0xf] %v2623
      %2752 = vst [vmem:[#allocation9 + $0xb8] sm:$0xf] %v2624
      %2753 = vst [vmem:[#allocation9 + $0xbc] sm:$0xf] %v2625
      %2754 = vst [vmem:[#allocation9 + $0xc0] sm:$0xf] %v2626
      %2755 = vst [vmem:[#allocation9 + $0xc4] sm:$0xf] %v2627
      %2756 = vst [vmem:[#allocation9 + $0xc8] sm:$0xf] %v2628
      %2757 = vst [vmem:[#allocation9 + $0xcc] sm:$0xf] %v2629
      %2758 = vst [vmem:[#allocation9 + $0xd0] sm:$0xf] %v2630
      %2759 = vst [vmem:[#allocation9 + $0xd4] sm:$0xf] %v2631
      %2760 = vst [vmem:[#allocation9 + $0xd8] sm:$0xf] %v2632
      %2761 = vst [vmem:[#allocation9 + $0xdc] sm:$0xf] %v2633
      %2762 = vst [vmem:[#allocation9 + $0xe0] sm:$0xf] %v2634
      %2763 = vst [vmem:[#allocation9 + $0xe4] sm:$0xf] %v2635
      %2764 = vst [vmem:[#allocation9 + $0xe8] sm:$0xf] %v2636
      %2765 = vst [vmem:[#allocation9 + $0xec] sm:$0xf] %v2637
      %2766 = vst [vmem:[#allocation9 + $0xf0] sm:$0xf] %v2638
      %2767 = vst [vmem:[#allocation9 + $0xf4] sm:$0xf] %v2639
      %2768 = vst [vmem:[#allocation9 + $0xf8] sm:$0xf] %v2640
      %2769 = vst [vmem:[#allocation9 + $0xfc] sm:$0xf] %v2641
    $region37: #{tpu_custom_call.1} parent=1 // pred_fallthru
      _
    // Predicated region
    $region38: #{tpu_custom_call.1} parent=1 // pred_check
      _
    $region39: #{tpu_custom_call.1} parent=1 // pred_check_branch
      %2771 = sbr.rel (0) target = $region41
    $region40: #{tpu_custom_call.1} parent=1 // pred_region
      %s2773 = ssub.s32 4096, 4096
      %2774 = vsyncadd [#allocation5], %s2773
      %s2775 = sshll.u32 [#allocation9], 4
      %s2776 = int_to_ptr.vmem [resolvable:$true] %s2775
      %2781 = dma.vmem_to_hbm [thread:$0]  %s2776, 4096, %s4, [#allocation5], 64, 64, 4
    $region41: #{tpu_custom_call.1} parent=1 // pred_fallthru
      _
    // Predicated region
    $region42: #{tpu_custom_call.1} parent=1 // pred_check
      _
    $region43: #{tpu_custom_call.1} parent=1 // pred_check_branch
      %2783 = sbr.rel (0) target = $region45
    $region44: #{tpu_custom_call.1} parent=1 // pred_region
      %2784 = dma.done [#allocation5], 4096
    $region45: #{tpu_custom_call.1} parent=1 // pred_fallthru
      _
    %2785 = vsyncpa [#allocation4], 1
    %2786 = vsyncpa [#allocation7], 1
    %2787 = vsyncpa [#allocation5], 1

</llo_original>
